<compile_context>
chip_gen: v7x
topology: tpu7x:2x2x1
jax: 0.10.0
libtpu: 0.0.40
codegen_flags: <defaults>
</compile_context>

<pallas_src>
import jax
import jax.numpy as jnp
import numpy as np
from jax import lax
from jax.experimental import pallas as pl
from jax.experimental.pallas import tpu as pltpu

CIN = 4
L = 20                       # MaxPool1d(2) -> 10, matching fc1's 260*10 input features
LP = L // 2
KMAX = 7
F_PATCH = KMAX * CIN         # 28
C_OUT = 260                  # 50 + 100 + 70 + 40
DIM_Y = 8                    # dim_fc is an undefined global in the torch source;
DIM_FC = 100 + DIM_Y         # we choose dim_fc = 108  =>  y has 8 features.
HP = 128                     # hidden widths 100/80/60 zero-padded to 128 lanes
BT = 8                       # batch rows per grid step (one f32 sublane tile)

CONV_CFG = [(50, 1), (100, 3), (70, 5), (40, 7)]   # (out_channels, kernel_width)


# ------------------------------- Pallas kernel ------------------------------ #

def fused_kernel(p_ref, ypad_ref, wc_ref, bc_ref, w1_ref, w2_ref, bias_ref, out_ref):
    """Conv1d x4 + MaxPool1d(2) + ReLU + fc1 + concat(y) + fc2 stack + Sigmoid, one batch tile."""
    nrow = LP * BT
    # Conv for all (even|odd, position, batch) rows of this tile: (2*LP*BT, 28) @ (28, 260).
    conv = jnp.dot(p_ref[...], wc_ref[...],
                   preferred_element_type=jnp.float32) + bc_ref[0:1, :]
    # MaxPool1d(2): even half vs odd half (both ordered p*BT + b), then ReLU.
    pooled = jnp.maximum(jnp.maximum(conv[:nrow, :], conv[nrow:, :]), 0.0)       # (LP*BT, 260)

    # fc1 (torch flatten feature index = c*10 + p) as ONE batched contraction over positions,
    # followed by a single sum over the position axis (replaces 10 serially-dependent dots).
    pooled3 = pooled.reshape(LP, BT, C_OUT).astype(jnp.bfloat16)                 # (LP, BT, 260)
    part = lax.dot_general(pooled3, w1_ref[...],
                           dimension_numbers=(((2,), (1,)), ((0,), (0,))),
                           preferred_element_type=jnp.float32)                   # (LP, BT, 128)
    h1 = jnp.maximum(jnp.sum(part, axis=0) + bias_ref[0:1, :], 0.0)              # (BT, 128); lanes 100.. == 0
    # torch.cat((fc1(x), y), dim=1): y lives in the exactly-zero padded lanes 100..107.
    h1 = h1 + ypad_ref[...]

    def fc(h, i):
        return jnp.dot(h.astype(jnp.bfloat16), w2_ref[i],
                       preferred_element_type=jnp.float32) + bias_ref[i + 1:i + 2, :]

    h2 = jnp.maximum(fc(h1, 0), 0.0)
    h3 = jnp.maximum(fc(h2, 1), 0.0)
    h4 = jnp.maximum(fc(h3, 2), 0.0)
    logits = fc(h4, 3)                                   # only lane 0 is meaningful
    out_ref[...] = 1.0 / (1.0 + jnp.exp(-logits))        # exact sigmoid, lane-dense (BT,128) store


# ------------------------------- glue (JAX) --------------------------------- #

def _pad_rows(a, n):
    return jnp.pad(a, ((0, n - a.shape[0]),) + ((0, 0),) * (a.ndim - 1))


@jax.jit
def deepseq_cnn_forward(x, y, kp):
    """x: (B, 4, L) NCL float32; y: (B, DIM_Y) float32 -> (B, 1) sigmoid output."""
    b_in = x.shape[0]
    nt = pl.cdiv(b_in, BT)
    bp = nt * BT
    x = _pad_rows(x, bp)
    y = _pad_rows(y, bp)

    # im2col with a 7-tap centered frame (smaller conv kernels are zero-padded inside Wc).
    xt = jnp.transpose(x, (0, 2, 1))                                # (Bp, L, 4)
    xp = jnp.pad(xt, ((0, 0), (3, 3), (0, 0)))                      # (Bp, L+6, 4)
    idx = jnp.arange(L)[:, None] + jnp.arange(KMAX)[None, :]        # (L, 7)
    patches = xp[:, idx, :].reshape(bp, L, F_PATCH)                 # feature = t*4 + ci
    # Row order per batch tile:  r = eo*LP*BT + p*BT + b    (output position l = 2p + eo)
    P = (patches.reshape(nt, BT, LP, 2, F_PATCH)
                .transpose(0, 3, 2, 1, 4)
                .reshape(nt * 2 * LP * BT, F_PATCH)
                .astype(jnp.bfloat16))
    ypad = jnp.pad(y, ((0, 0), (100, HP - 100 - DIM_Y)))            # y at lanes 100..107 (f32)

    out = pl.pallas_call(
        fused_kernel,
        out_shape=jax.ShapeDtypeStruct((bp, HP), jnp.float32),
        grid_spec=pltpu.PrefetchScalarGridSpec(
            num_scalar_prefetch=0,
            grid=(nt,),
            in_specs=[
                pl.BlockSpec((2 * LP * BT, F_PATCH), lambda i: (i, 0)),   # patches (per tile)
                pl.BlockSpec((BT, HP), lambda i: (i, 0)),                 # y (padded, per tile)
                pl.BlockSpec((F_PATCH, C_OUT), lambda i: (0, 0)),         # Wc      (resident)
                pl.BlockSpec((8, C_OUT), lambda i: (0, 0)),               # conv bias (resident)
                pl.BlockSpec((LP, C_OUT, HP), lambda i: (0, 0, 0)),       # W1resh  (resident)
                pl.BlockSpec((4, HP, HP), lambda i: (0, 0, 0)),           # W2pack  (resident)
                pl.BlockSpec((8, HP), lambda i: (0, 0)),                  # fc biases (resident)
            ],
            out_specs=pl.BlockSpec((BT, HP), lambda i: (i, 0)),
        ),
        compiler_params=pltpu.CompilerParams(
            dimension_semantics=("parallel",)),     # batch tiles split across TCs on v7x
    )(P, ypad, kp["Wc"], kp["bc"], kp["W1resh"], kp["W2pack"], kp["biasp"])
    return out[:b_in, :1]


# --------------------------- parameter construction ------------------------- #

def init_torch_params(key):
    """Torch-layout parameters (Conv1d: (Cout,Cin,k); Linear: (out,in))."""
    def u(k, fan_in, shape):
        bound = 1.0 / np.sqrt(fan_in)
        return jax.random.uniform(k, shape, jnp.float32, -bound, bound)

    keys = iter(jax.random.split(key, 20))
    tp = {}
    for i, (cout, k) in enumerate(CONV_CFG):
        tp[f"cw{i}"] = u(next(keys), CIN * k, (cout, CIN, k))
        tp[f"cb{i}"] = u(next(keys), CIN * k, (cout,))
    tp["W1"], tp["b1"] = u(next(keys), 2600, (100, 2600)), u(next(keys), 2600, (100,))
    tp["W2a"], tp["b2a"] = u(next(keys), DIM_FC, (100, DIM_FC)), u(next(keys), DIM_FC, (100,))
    tp["W2b"], tp["b2b"] = u(next(keys), 100, (80, 100)), u(next(keys), 100, (80,))
    tp["W2c"], tp["b2c"] = u(next(keys), 80, (60, 80)), u(next(keys), 80, (60,))
    tp["W2d"], tp["b2d"] = u(next(keys), 60, (1, 60)), u(next(keys), 60, (1,))
    return tp


def pack_params(tp):
    """Fuse / pad / permute torch params into kernel-friendly (bf16) buffers."""
    # Four Conv1d weights fused into one (28, 260) matrix over the 7-tap patch frame.
    Wc = np.zeros((F_PATCH, C_OUT), np.float32)
    bc = np.zeros((8, C_OUT), np.float32)                 # row 0 used, rest zero (alignment)
    off = 0
    for i, (cout, k) in enumerate(CONV_CFG):
        w = np.asarray(tp[f"cw{i}"], np.float32)          # (cout, 4, k)
        pad = (k - 1) // 2
        for j in range(k):
            t = j + (3 - pad)                             # tap position in the 7-tap frame
            Wc[t * CIN:(t + 1) * CIN, off:off + cout] = w[:, :, j].T
        bc[0, off:off + cout] = np.asarray(tp[f"cb{i}"], np.float32)
        off += cout

    # fc1 (2600 -> 100): torch in-feature = c*10 + p ; reshape to per-position (260, 128) blocks.
    W1 = np.asarray(tp["W1"], np.float32)                 # (100, 2600)
    W1resh = np.zeros((LP, C_OUT, HP), np.float32)
    W1resh[:, :, :100] = W1.T.reshape(C_OUT, LP, 100).transpose(1, 0, 2)

    # fc2 stack, padded to 128 lanes and packed into one buffer.
    W2pack = np.zeros((4, HP, HP), np.float32)
    W2a = np.asarray(tp["W2a"], np.float32)               # (100, 108)
    W2pack[0, :100, :100] = W2a[:, :100].T                # h1 part
    W2pack[0, 100:100 + DIM_Y, :100] = W2a[:, 100:].T     # y part (lives in the padded lanes)
    W2pack[1, :100, :80] = np.asarray(tp["W2b"], np.float32).T
    W2pack[2, :80, :60] = np.asarray(tp["W2c"], np.float32).T
    W2pack[3, :60, :1] = np.asarray(tp["W2d"], np.float32).T

    biasp = np.zeros((8, HP), np.float32)
    biasp[0, :100] = np.asarray(tp["b1"], np.float32)
    biasp[1, :100] = np.asarray(tp["b2a"], np.float32)
    biasp[2, :80] = np.asarray(tp["b2b"], np.float32)
    biasp[3, :60] = np.asarray(tp["b2c"], np.float32)
    biasp[4, :1] = np.asarray(tp["b2d"], np.float32)

    # Weights in bf16 (halves HBM->VMEM bytes); zero padding stays exactly zero. Biases f32.
    return dict(Wc=jnp.asarray(Wc, dtype=jnp.bfloat16),
                bc=jnp.asarray(bc),
                W1resh=jnp.asarray(W1resh, dtype=jnp.bfloat16),
                W2pack=jnp.asarray(W2pack, dtype=jnp.bfloat16),
                biasp=jnp.asarray(biasp))


# ------------------------------ pure-JAX reference -------------------------- #

def reference_forward(x, y, tp):
    """Faithful eval-mode DeepSeqCNN forward (float32) from the torch-layout parameters."""
    b = x.shape[0]
    outs = []
    for i, (cout, k) in enumerate(CONV_CFG):
        pad = (k - 1) // 2
        o = lax.conv_general_dilated(x, tp[f"cw{i}"], window_strides=(1,),
                                     padding=[(pad, pad)],
                                     dimension_numbers=("NCH", "OIH", "NCH"))
        outs.append(o + tp[f"cb{i}"][None, :, None])
    cat = jnp.concatenate(outs, axis=1)                               # (B, 260, L)
    pooled = jnp.maximum(jnp.maximum(cat[:, :, 0::2], cat[:, :, 1::2]), 0.0)
    flat = pooled.reshape(b, C_OUT * LP)                              # torch .view(-1, 260*10)
    h1 = jnp.maximum(flat @ tp["W1"].T + tp["b1"], 0.0)
    xy = jnp.concatenate([h1, y], axis=1)
    h2 = jnp.maximum(xy @ tp["W2a"].T + tp["b2a"], 0.0)
    h3 = jnp.maximum(h2 @ tp["W2b"].T + tp["b2b"], 0.0)
    h4 = jnp.maximum(h3 @ tp["W2c"].T + tp["b2c"], 0.0)
    return jax.nn.sigmoid(h4 @ tp["W2d"].T + tp["b2d"])


if __name__ == "__main__":
    key = jax.random.PRNGKey(0)
    kparam, kx, ky = jax.random.split(key, 3)
    tp = init_torch_params(kparam)
    kp = pack_params(tp)

    B = 2
    x = jax.random.normal(kx, (B, CIN, L), jnp.float32)   # one-hot-like DNA input slot
    y = jax.random.normal(ky, (B, DIM_Y), jnp.float32)    # annotation features

    out = jax.block_until_ready(deepseq_cnn_forward(x, y, kp))
    assert out.shape == (B, 1)

    ref = reference_forward(x, y, tp)
    # bf16 weights/activations with f32 accumulation: compare at bf16-appropriate tolerance.
    np.testing.assert_allclose(np.asarray(out), np.asarray(ref), rtol=2e-2, atol=2e-2)
    print("KERNEL_OK")
</pallas_src>

<mosaic_0001>
module attributes {stable_mosaic.version = 11 : i64} {
  func.func @fused_kernel(%arg0: i32, %arg1: memref<160x28xbf16, #tpu.memory_space<vmem>>, %arg2: memref<8x128xf32, #tpu.memory_space<vmem>>, %arg3: memref<28x260xbf16, #tpu.memory_space<vmem>>, %arg4: memref<8x260xf32, #tpu.memory_space<vmem>>, %arg5: memref<10x260x128xbf16, #tpu.memory_space<vmem>>, %arg6: memref<4x128x128xbf16, #tpu.memory_space<vmem>>, %arg7: memref<8x128xf32, #tpu.memory_space<vmem>>, %arg8: memref<8x128xf32, #tpu.memory_space<vmem>>) attributes {dimension_semantics = [#tpu.dimension_semantics<parallel>], iteration_bounds = array<i64: 1>, scalar_prefetch = 0 : i64, scratch_operands = 0 : i64, tpu.core_type = #tpu.core_type<tc>, window_params = [{transform_indices = @transform_0, window_bounds = array<i64: 160, 28>}, {transform_indices = @transform_1, window_bounds = array<i64: 8, 128>}, {pipeline_mode = #tpu.pipeline_mode<synchronous>, transform_indices = @transform_2, window_bounds = array<i64: 28, 260>}, {pipeline_mode = #tpu.pipeline_mode<synchronous>, transform_indices = @transform_3, window_bounds = array<i64: 8, 260>}, {pipeline_mode = #tpu.pipeline_mode<synchronous>, transform_indices = @transform_4, window_bounds = array<i64: 10, 260, 128>}, {pipeline_mode = #tpu.pipeline_mode<synchronous>, transform_indices = @transform_5, window_bounds = array<i64: 4, 128, 128>}, {pipeline_mode = #tpu.pipeline_mode<synchronous>, transform_indices = @transform_6, window_bounds = array<i64: 8, 128>}, {transform_indices = @transform_7, window_bounds = array<i64: 8, 128>}]} {
    %c0 = arith.constant 0 : index
    %c0_0 = arith.constant 0 : index
    %0 = vector.load %arg1[%c0, %c0_0] : memref<160x28xbf16, #tpu.memory_space<vmem>>, vector<160x28xbf16>
    %c0_1 = arith.constant 0 : index
    %c0_2 = arith.constant 0 : index
    %1 = vector.load %arg3[%c0_1, %c0_2] : memref<28x260xbf16, #tpu.memory_space<vmem>>, vector<28x260xbf16>
    %cst = arith.constant dense<0.000000e+00> : vector<160x260xf32>
    %2 = tpu.matmul %0, %1, %cst {dimension_numbers = #tpu.dot_dimension_numbers<[1], [0], [0], [1], [0, 0, 1, 1], [], []>} : vector<160x28xbf16>, vector<28x260xbf16>, vector<160x260xf32> -> vector<160x260xf32>
    %c0_3 = arith.constant 0 : index
    %c0_4 = arith.constant 0 : index
    %3 = vector.load %arg4[%c0_3, %c0_4] : memref<8x260xf32, #tpu.memory_space<vmem>>, vector<1x260xf32>
    %4 = vector.broadcast %3 : vector<1x260xf32> to vector<160x260xf32>
    %5 = arith.addf %2, %4 : vector<160x260xf32>
    %6 = vector.extract_strided_slice %5 {offsets = [0, 0], sizes = [80, 260], strides = [1, 1]} : vector<160x260xf32> to vector<80x260xf32>
    %7 = vector.extract_strided_slice %5 {offsets = [80, 0], sizes = [80, 260], strides = [1, 1]} : vector<160x260xf32> to vector<80x260xf32>
    %8 = arith.maximumf %6, %7 : vector<80x260xf32>
    %cst_5 = arith.constant 0.000000e+00 : f32
    %9 = vector.broadcast %cst_5 : f32 to vector<80x260xf32>
    %10 = arith.maximumf %8, %9 : vector<80x260xf32>
    %11 = vector.shape_cast %10 : vector<80x260xf32> to vector<10x8x260xf32>
    %12 = arith.truncf %11 : vector<10x8x260xf32> to vector<10x8x260xbf16>
    %c0_6 = arith.constant 0 : index
    %c0_7 = arith.constant 0 : index
    %c0_8 = arith.constant 0 : index
    %13 = vector.load %arg5[%c0_6, %c0_7, %c0_8] : memref<10x260x128xbf16, #tpu.memory_space<vmem>>, vector<10x260x128xbf16>
    %cst_9 = arith.constant dense<0.000000e+00> : vector<10x8x128xf32>
    %14 = tpu.matmul %12, %13, %cst_9 {dimension_numbers = #tpu.dot_dimension_numbers<[2], [1], [1], [2], [0, 0, 0, 1, 1, 2], [0], [0]>} : vector<10x8x260xbf16>, vector<10x260x128xbf16>, vector<10x8x128xf32> -> vector<10x8x128xf32>
    %cst_10 = arith.constant dense<0.000000e+00> : vector<8x128xf32>
    %15 = vector.multi_reduction <add>, %14, %cst_10 [0] : vector<10x8x128xf32> to vector<8x128xf32>
    %c0_11 = arith.constant 0 : index
    %c0_12 = arith.constant 0 : index
    %16 = vector.load %arg7[%c0_11, %c0_12] : memref<8x128xf32, #tpu.memory_space<vmem>>, vector<1x128xf32>
    %17 = vector.broadcast %16 : vector<1x128xf32> to vector<8x128xf32>
    %18 = arith.addf %15, %17 : vector<8x128xf32>
    %cst_13 = arith.constant 0.000000e+00 : f32
    %19 = vector.broadcast %cst_13 : f32 to vector<8x128xf32>
    %20 = arith.maximumf %18, %19 : vector<8x128xf32>
    %c0_14 = arith.constant 0 : index
    %c0_15 = arith.constant 0 : index
    %21 = vector.load %arg2[%c0_14, %c0_15] : memref<8x128xf32, #tpu.memory_space<vmem>>, vector<8x128xf32>
    %22 = arith.addf %20, %21 : vector<8x128xf32>
    %23 = arith.truncf %22 : vector<8x128xf32> to vector<8x128xbf16>
    %c0_16 = arith.constant 0 : index
    %c0_17 = arith.constant 0 : index
    %c0_18 = arith.constant 0 : index
    %24 = vector.load %arg6[%c0_16, %c0_17, %c0_18] : memref<4x128x128xbf16, #tpu.memory_space<vmem>>, vector<1x128x128xbf16>
    %25 = vector.shape_cast %24 : vector<1x128x128xbf16> to vector<128x128xbf16>
    %cst_19 = arith.constant dense<0.000000e+00> : vector<8x128xf32>
    %26 = tpu.matmul %23, %25, %cst_19 {dimension_numbers = #tpu.dot_dimension_numbers<[1], [0], [0], [1], [0, 0, 1, 1], [], []>} : vector<8x128xbf16>, vector<128x128xbf16>, vector<8x128xf32> -> vector<8x128xf32>
    %c1 = arith.constant 1 : index
    %c0_20 = arith.constant 0 : index
    %27 = vector.load %arg7[%c1, %c0_20] : memref<8x128xf32, #tpu.memory_space<vmem>>, vector<1x128xf32>
    %28 = vector.broadcast %27 : vector<1x128xf32> to vector<8x128xf32>
    %29 = arith.addf %26, %28 : vector<8x128xf32>
    %cst_21 = arith.constant 0.000000e+00 : f32
    %30 = vector.broadcast %cst_21 : f32 to vector<8x128xf32>
    %31 = arith.maximumf %29, %30 : vector<8x128xf32>
    %32 = arith.truncf %31 : vector<8x128xf32> to vector<8x128xbf16>
    %c1_22 = arith.constant 1 : index
    %c0_23 = arith.constant 0 : index
    %c0_24 = arith.constant 0 : index
    %33 = vector.load %arg6[%c1_22, %c0_23, %c0_24] : memref<4x128x128xbf16, #tpu.memory_space<vmem>>, vector<1x128x128xbf16>
    %34 = vector.shape_cast %33 : vector<1x128x128xbf16> to vector<128x128xbf16>
    %cst_25 = arith.constant dense<0.000000e+00> : vector<8x128xf32>
    %35 = tpu.matmul %32, %34, %cst_25 {dimension_numbers = #tpu.dot_dimension_numbers<[1], [0], [0], [1], [0, 0, 1, 1], [], []>} : vector<8x128xbf16>, vector<128x128xbf16>, vector<8x128xf32> -> vector<8x128xf32>
    %c2 = arith.constant 2 : index
    %c0_26 = arith.constant 0 : index
    %36 = vector.load %arg7[%c2, %c0_26] : memref<8x128xf32, #tpu.memory_space<vmem>>, vector<1x128xf32>
    %37 = vector.broadcast %36 : vector<1x128xf32> to vector<8x128xf32>
    %38 = arith.addf %35, %37 : vector<8x128xf32>
    %cst_27 = arith.constant 0.000000e+00 : f32
    %39 = vector.broadcast %cst_27 : f32 to vector<8x128xf32>
    %40 = arith.maximumf %38, %39 : vector<8x128xf32>
    %41 = arith.truncf %40 : vector<8x128xf32> to vector<8x128xbf16>
    %c2_28 = arith.constant 2 : index
    %c0_29 = arith.constant 0 : index
    %c0_30 = arith.constant 0 : index
    %42 = vector.load %arg6[%c2_28, %c0_29, %c0_30] : memref<4x128x128xbf16, #tpu.memory_space<vmem>>, vector<1x128x128xbf16>
    %43 = vector.shape_cast %42 : vector<1x128x128xbf16> to vector<128x128xbf16>
    %cst_31 = arith.constant dense<0.000000e+00> : vector<8x128xf32>
    %44 = tpu.matmul %41, %43, %cst_31 {dimension_numbers = #tpu.dot_dimension_numbers<[1], [0], [0], [1], [0, 0, 1, 1], [], []>} : vector<8x128xbf16>, vector<128x128xbf16>, vector<8x128xf32> -> vector<8x128xf32>
    %c3 = arith.constant 3 : index
    %c0_32 = arith.constant 0 : index
    %45 = vector.load %arg7[%c3, %c0_32] : memref<8x128xf32, #tpu.memory_space<vmem>>, vector<1x128xf32>
    %46 = vector.broadcast %45 : vector<1x128xf32> to vector<8x128xf32>
    %47 = arith.addf %44, %46 : vector<8x128xf32>
    %cst_33 = arith.constant 0.000000e+00 : f32
    %48 = vector.broadcast %cst_33 : f32 to vector<8x128xf32>
    %49 = arith.maximumf %47, %48 : vector<8x128xf32>
    %50 = arith.truncf %49 : vector<8x128xf32> to vector<8x128xbf16>
    %c3_34 = arith.constant 3 : index
    %c0_35 = arith.constant 0 : index
    %c0_36 = arith.constant 0 : index
    %51 = vector.load %arg6[%c3_34, %c0_35, %c0_36] : memref<4x128x128xbf16, #tpu.memory_space<vmem>>, vector<1x128x128xbf16>
    %52 = vector.shape_cast %51 : vector<1x128x128xbf16> to vector<128x128xbf16>
    %cst_37 = arith.constant dense<0.000000e+00> : vector<8x128xf32>
    %53 = tpu.matmul %50, %52, %cst_37 {dimension_numbers = #tpu.dot_dimension_numbers<[1], [0], [0], [1], [0, 0, 1, 1], [], []>} : vector<8x128xbf16>, vector<128x128xbf16>, vector<8x128xf32> -> vector<8x128xf32>
    %c4 = arith.constant 4 : index
    %c0_38 = arith.constant 0 : index
    %54 = vector.load %arg7[%c4, %c0_38] : memref<8x128xf32, #tpu.memory_space<vmem>>, vector<1x128xf32>
    %55 = vector.broadcast %54 : vector<1x128xf32> to vector<8x128xf32>
    %56 = arith.addf %53, %55 : vector<8x128xf32>
    %cst_39 = arith.constant 0.000000e+00 : f32
    %57 = vector.broadcast %cst_39 : f32 to vector<8x128xf32>
    %58 = arith.subf %57, %56 : vector<8x128xf32>
    %59 = math.exp %58 : vector<8x128xf32>
    %cst_40 = arith.constant 1.000000e+00 : f32
    %60 = vector.broadcast %cst_40 : f32 to vector<8x128xf32>
    %61 = arith.addf %60, %59 : vector<8x128xf32>
    %cst_41 = arith.constant 1.000000e+00 : f32
    %62 = vector.broadcast %cst_41 : f32 to vector<8x128xf32>
    %63 = arith.divf %62, %61 : vector<8x128xf32>
    %c0_42 = arith.constant 0 : index
    %c0_43 = arith.constant 0 : index
    %64 = vector.load %arg8[%c0_42, %c0_43] : memref<8x128xf32, #tpu.memory_space<vmem>>, vector<8x128xf32>
    tpu.vector_store %arg8[%c0_42, %c0_43], %63 {strides = array<i32>} : memref<8x128xf32, #tpu.memory_space<vmem>>, vector<8x128xf32>,
    return
  }
  func.func @transform_0(%arg0: i32) -> (i32, i32) {
    %c0_i32 = arith.constant 0 : i32
    %c0_i32_0 = arith.constant 0 : i32
    return %arg0, %c0_i32 : i32, i32
  }
  func.func @transform_1(%arg0: i32) -> (i32, i32) {
    %c0_i32 = arith.constant 0 : i32
    %c0_i32_0 = arith.constant 0 : i32
    return %arg0, %c0_i32 : i32, i32
  }
  func.func @transform_2(%arg0: i32) -> (i32, i32) {
    %c0_i32 = arith.constant 0 : i32
    %c0_i32_0 = arith.constant 0 : i32
    %c0_i32_1 = arith.constant 0 : i32
    return %c0_i32, %c0_i32_0 : i32, i32
  }
  func.func @transform_3(%arg0: i32) -> (i32, i32) {
    %c0_i32 = arith.constant 0 : i32
    %c0_i32_0 = arith.constant 0 : i32
    %c0_i32_1 = arith.constant 0 : i32
    return %c0_i32, %c0_i32_0 : i32, i32
  }
  func.func @transform_4(%arg0: i32) -> (i32, i32, i32) {
    %c0_i32 = arith.constant 0 : i32
    %c0_i32_0 = arith.constant 0 : i32
    %c0_i32_1 = arith.constant 0 : i32
    %c0_i32_2 = arith.constant 0 : i32
    return %c0_i32, %c0_i32_0, %c0_i32_1 : i32, i32, i32
  }
  func.func @transform_5(%arg0: i32) -> (i32, i32, i32) {
    %c0_i32 = arith.constant 0 : i32
    %c0_i32_0 = arith.constant 0 : i32
    %c0_i32_1 = arith.constant 0 : i32
    %c0_i32_2 = arith.constant 0 : i32
    return %c0_i32, %c0_i32_0, %c0_i32_1 : i32, i32, i32
  }
  func.func @transform_6(%arg0: i32) -> (i32, i32) {
    %c0_i32 = arith.constant 0 : i32
    %c0_i32_0 = arith.constant 0 : i32
    %c0_i32_1 = arith.constant 0 : i32
    return %c0_i32, %c0_i32_0 : i32, i32
  }
  func.func @transform_7(%arg0: i32) -> (i32, i32) {
    %c0_i32 = arith.constant 0 : i32
    %c0_i32_0 = arith.constant 0 : i32
    return %arg0, %c0_i32 : i32, i32
  }
}

</mosaic_0001>

<llo_original>
// kernel: deepseq_cnn_forward.1
$region0: #{deepseq_cnn_forward.1}
  #allocation0 [shape = 'u32[]', space=smem, size = 0x4, offset = 0x4, fixed_abs, tag = 'smem constant byte address 0x4 - core index']
  #allocation1 [shape = 'u32[144,128]{1,0:T(1,128)}', space=vmem, size = 0x12000, scoped, tag = 'internal scratch']
  %s0 = inlined_call_operand.vmem [shape: bf16[160,28], index: 0, kind: input, shape index: {}]
  %s1 = inlined_call_operand.vmem [shape: f32[8,128], index: 1, kind: input, shape index: {}]
  %s2 = inlined_call_operand.vmem [shape: bf16[28,260], index: 2, kind: input, shape index: {}]
  %s3 = inlined_call_operand.vmem [shape: f32[8,260], index: 3, kind: input, shape index: {}]
  %s4 = inlined_call_operand.vmem [shape: bf16[10,260,128], index: 4, kind: input, shape index: {}]
  %s5 = inlined_call_operand.vmem [shape: bf16[4,128,128], index: 5, kind: input, shape index: {}]
  %s6 = inlined_call_operand.vmem [shape: f32[8,128], index: 6, kind: input, shape index: {}]
  %s7 = inlined_call_operand.vmem [shape: f32[8,128], index: 7, kind: output, shape index: {}]
  %s8 = sld [smem:[#allocation0]]
  $region38: #{deepseq_cnn_forward.1} parent=0
    _
  %s10 = ssub.s32 1, %s8
  %s11 = scalar_select 0, %s10, %s8
  // Predicated region
  $region2: #{deepseq_cnn_forward.1} parent=0 // pred_check
    _
  $region3: #{deepseq_cnn_forward.1} parent=0 // pred_check_branch
    %13 = sbr.rel (0) target = $region5
  $region4: #{deepseq_cnn_forward.1} parent=0 // pred_region
    _
  $region5: #{deepseq_cnn_forward.1} parent=0 // pred_fallthru
    _
  // Predicated region
  $region6: #{deepseq_cnn_forward.1} parent=0 // pred_check
    _
  $region7: #{deepseq_cnn_forward.1} parent=0 // pred_check_branch
    %15 = sbr.rel (0) target = $region9
  $region8: #{deepseq_cnn_forward.1} parent=0 // pred_region
    _
  $region9: #{deepseq_cnn_forward.1} parent=0 // pred_fallthru
    _
  // Predicated region
  $region10: #{deepseq_cnn_forward.1} parent=0 // pred_check
    _
  $region11: #{deepseq_cnn_forward.1} parent=0 // pred_check_branch
    %17 = sbr.rel (0) target = $region13
  $region12: #{deepseq_cnn_forward.1} parent=0 // pred_region
    _
  $region13: #{deepseq_cnn_forward.1} parent=0 // pred_fallthru
    _
  // Predicated region
  $region14: #{deepseq_cnn_forward.1} parent=0 // pred_check
    _
  $region15: #{deepseq_cnn_forward.1} parent=0 // pred_check_branch
    %19 = sbr.rel (0) target = $region17
  $region16: #{deepseq_cnn_forward.1} parent=0 // pred_region
    _
  $region17: #{deepseq_cnn_forward.1} parent=0 // pred_fallthru
    _
  // Predicated region
  $region18: #{deepseq_cnn_forward.1} parent=0 // pred_check
    _
  $region19: #{deepseq_cnn_forward.1} parent=0 // pred_check_branch
    %21 = sbr.rel (0) target = $region21
  $region20: #{deepseq_cnn_forward.1} parent=0 // pred_region
    _
  $region21: #{deepseq_cnn_forward.1} parent=0 // pred_fallthru
    _
  // Predicated region
  $region22: #{deepseq_cnn_forward.1} parent=0 // pred_check
    _
  $region23: #{deepseq_cnn_forward.1} parent=0 // pred_check_branch
    %23 = sbr.rel (0) target = $region25
  $region24: #{deepseq_cnn_forward.1} parent=0 // pred_region
    _
  $region25: #{deepseq_cnn_forward.1} parent=0 // pred_fallthru
    _
  // Predicated region
  $region26: #{deepseq_cnn_forward.1} parent=0 // pred_check
    _
  $region27: #{deepseq_cnn_forward.1} parent=0 // pred_check_branch
    %25 = sbr.rel (0) target = $region29
  $region28: #{deepseq_cnn_forward.1} parent=0 // pred_region
    _
  $region29: #{deepseq_cnn_forward.1} parent=0 // pred_fallthru
    _
  %v27 = vld [vmem:[%s0] sm:$0xf]
  %v28 = vld [vmem:[%s0 + $0x4] sm:$0xf]
  %v29 = vld [vmem:[%s0 + $0x8] sm:$0xf]
  %v30 = vld [vmem:[%s0 + $0xc] sm:$0xf]
  %v31 = vld [vmem:[%s0 + $0x10] sm:$0xf]
  %v32 = vld [vmem:[%s0 + $0x14] sm:$0xf]
  %v33 = vld [vmem:[%s0 + $0x18] sm:$0xf]
  %v34 = vld [vmem:[%s0 + $0x1c] sm:$0xf]
  %v35 = vld [vmem:[%s0 + $0x20] sm:$0xf]
  %v36 = vld [vmem:[%s0 + $0x24] sm:$0xf]
  %v37 = vld [vmem:[%s0 + $0x28] sm:$0xf]
  %v38 = vld [vmem:[%s0 + $0x2c] sm:$0xf]
  %v39 = vld [vmem:[%s0 + $0x30] sm:$0xf]
  %v40 = vld [vmem:[%s0 + $0x34] sm:$0xf]
  %v41 = vld [vmem:[%s0 + $0x38] sm:$0xf]
  %v42 = vld [vmem:[%s0 + $0x3c] sm:$0xf]
  %v43 = vld [vmem:[%s0 + $0x40] sm:$0xf]
  %v44 = vld [vmem:[%s0 + $0x44] sm:$0xf]
  %v45 = vld [vmem:[%s0 + $0x48] sm:$0xf]
  %v46 = vld [vmem:[%s0 + $0x4c] sm:$0xf]
  %v47 = vld [vmem:[%s2] sm:$0xff]
  %v48 = vld [vmem:[%s2 + $0x8] sm:$0xf]
  %v49 = vld [vmem:[%s2 + $0xc] sm:$0xff]
  %v50 = vld [vmem:[%s2 + $0x14] sm:$0xf]
  %v51 = vld [vmem:[%s2 + $0x18] sm:$0xff]
  %v52 = vld [vmem:[%s2 + $0x20] sm:$0xf]
  %v53 = vld [vmem:[%s2 + $0x24] sm:$0x33]
  %v54 = vld [vmem:[%s2 + $0x2c] sm:$0x3]
  %v55 = vld [vmem:[%s3] ss:$8 sm:$0x7]
  %v57 = vlaneseq
  %v58 = vshrl.u32 %v57, 7
  %v59 = vsub.s32 0, %v58
  %v60 = vrot.slane %v55, %v59
  %v61 = vlaneseq
  %v62 = vshrl.u32 %v61, 7
  %v63 = vsub.s32 1, %v62
  %v64 = vrot.slane %v55, %v63
  %v65 = vlaneseq
  %v66 = vshrl.u32 %v65, 7
  %v67 = vsub.s32 2, %v66
  %v68 = vrot.slane %v55, %v67
  %v92 = vunpack.c.l.b16 %v27
  %v93 = vunpack.c.l.b16 %v28
  %v94 = vunpack.c.l.b16 %v29
  %v95 = vunpack.c.l.b16 %v30
  %v96 = vunpack.c.l.b16 %v31
  %v97 = vunpack.c.l.b16 %v32
  %v98 = vunpack.c.l.b16 %v33
  %v99 = vunpack.c.l.b16 %v34
  %v100 = vunpack.c.l.b16 %v35
  %v101 = vunpack.c.l.b16 %v36
  %v102 = vunpack.c.l.b16 %v37
  %v103 = vunpack.c.l.b16 %v38
  %v104 = vunpack.c.l.b16 %v39
  %v105 = vunpack.c.l.b16 %v40
  %v106 = vunpack.c.l.b16 %v41
  %v107 = vunpack.c.l.b16 %v42
  %v108 = vunpack.c.l.b16 %v43
  %v109 = vunpack.c.l.b16 %v44
  %v110 = vunpack.c.l.b16 %v45
  %v111 = vunpack.c.l.b16 %v46
  %v112 = vpack.c.b16 %v93, %v92
  %v113 = vpack.c.b16 %v95, %v94
  %v114 = vpack.c.b16 %v97, %v96
  %v115 = vpack.c.b16 %v99, %v98
  %v116 = vpack.c.b16 %v101, %v100
  %v117 = vpack.c.b16 %v103, %v102
  %v118 = vpack.c.b16 %v105, %v104
  %v119 = vpack.c.b16 %v107, %v106
  %v120 = vpack.c.b16 %v109, %v108
  %v121 = vpack.c.b16 %v111, %v110
  %v130 = vunpack.c.l.b16 %v47
  %v131 = vunpack.c.h.b16 %v47
  %v132 = vunpack.c.l.b16 %v48
  %v133 = vunpack.c.l.b16 %v49
  %v134 = vunpack.c.h.b16 %v49
  %v135 = vunpack.c.l.b16 %v50
  %v136 = vunpack.c.l.b16 %v51
  %v137 = vunpack.c.h.b16 %v51
  %v138 = vunpack.c.l.b16 %v52
  %v139 = vunpack.c.l.b16 %v53
  %v140 = vunpack.c.h.b16 %v53
  %v141 = vunpack.c.l.b16 %v54
  %v142 = vpack.c.b16 %v133, %v130
  %v143 = vpack.c.b16 %v134, %v131
  %v144 = vpack.c.b16 %v135, %v132
  %v145 = vpack.c.b16 %v139, %v136
  %v146 = vpack.c.b16 %v140, %v137
  %v147 = vpack.c.b16 %v141, %v138
  %vm151 = vcmask 228352
  %v153 = vsel %vm151, %v112, 0
  %v156 = vsel %vm151, %v113, 0
  %v159 = vsel %vm151, %v114, 0
  %v162 = vsel %vm151, %v115, 0
  %v165 = vsel %vm151, %v116, 0
  %v168 = vsel %vm151, %v117, 0
  %v171 = vsel %vm151, %v118, 0
  %v174 = vsel %vm151, %v119, 0
  %v177 = vsel %vm151, %v120, 0
  %v180 = vsel %vm151, %v121, 0
  %vm182 = vcmask 1045504
  %v184 = vsel %vm182, %v145, 0
  %v187 = vsel %vm182, %v146, 0
  %v190 = vsel %vm182, %v147, 0
  %192 = vmatprep.subr.bf16.mxu0 %v143
  %193 = vmatpush1.bf16.msra.mxu0 %v142
  %194 = vmatprep.subr.bf16.mxu0 %v187
  %195 = vmatpush1.bf16.msra.mxu0 %v184
  %196 = vmatprep.subr.bf16.mxu0 0
  %197 = vmatpush1.bf16.msra.mxu0 0
  %198 = vmatprep.subr.bf16.mxu0 0
  %199 = vmatpush1.bf16.msra.mxu0 0
  %200 = vmatprep.subr.bf16.mxu0 0
  %201 = vmatpush1.bf16.msra.mxu0 0
  %202 = vmatprep.subr.bf16.mxu0 0
  %203 = vmatpush1.bf16.msra.mxu0 0
  %204 = vmatprep.subr.bf16.mxu0 0
  %205 = vmatpush1.bf16.msra.mxu0 0
  %206 = vmatprep.subr.bf16.mxu0 0
  %207 = vmatpush1.bf16.msra.mxu0 0
  %208 = vmatprep.subr.bf16.mxu0 0
  %209 = vmatpush1.bf16.msra.mxu0 0
  %210 = vmatprep.subr.bf16.mxu0 0
  %211 = vmatpush1.bf16.msra.mxu0 0
  %212 = vmatprep.subr.bf16.mxu0 0
  %213 = vmatpush1.bf16.msra.mxu0 0
  %214 = vmatprep.subr.bf16.mxu0 0
  %215 = vmatpush1.bf16.msra.mxu0 0
  %216 = vmatprep.subr.bf16.mxu0 0
  %217 = vmatpush1.bf16.msra.mxu0 0
  %218 = vmatprep.subr.bf16.mxu0 0
  %219 = vmatpush1.bf16.msra.mxu0 0
  %220 = vmatprep.subr.bf16.mxu0 0
  %221 = vmatpush1.bf16.msra.mxu0 0
  %222 = vmatprep.subr.bf16.mxu0 0
  %223 = vmatpush1.bf16.msra.mxu0 0
  %224 = vmatprep.mubr.bf16.mxu0 0
  %225 = vmatmul.mubr.bf16.gmra.mrb[0].mxu0 %v153
  %v226 = vpop.f32.mrb[0].mxu0
  %v227 = vadd.f32 %v60, %v226
  %v228 = vpop.f32.mrb[0].mxu0
  %v229 = vadd.f32 %v64, %v228
  %v230 = vpop.f32.mrb[0].mxu0
  %v231 = vadd.f32 %v60, %v230
  %v232 = vpop.f32.mrb[0].mxu0
  %v233 = vadd.f32 %v64, %v232
  %234 = vmatprep.mubr.bf16.mxu0 0
  %235 = vmatmul.mubr.bf16.gmra.mrb[0].mxu0 %v156
  %v236 = vpop.f32.mrb[0].mxu0
  %v237 = vadd.f32 %v60, %v236
  %v238 = vpop.f32.mrb[0].mxu0
  %v239 = vadd.f32 %v64, %v238
  %v240 = vpop.f32.mrb[0].mxu0
  %v241 = vadd.f32 %v60, %v240
  %v242 = vpop.f32.mrb[0].mxu0
  %v243 = vadd.f32 %v64, %v242
  %244 = vmatprep.mubr.bf16.mxu0 0
  %245 = vmatmul.mubr.bf16.gmra.mrb[0].mxu0 %v159
  %v246 = vpop.f32.mrb[0].mxu0
  %v247 = vadd.f32 %v60, %v246
  %v248 = vpop.f32.mrb[0].mxu0
  %v249 = vadd.f32 %v64, %v248
  %v250 = vpop.f32.mrb[0].mxu0
  %v251 = vadd.f32 %v60, %v250
  %v252 = vpop.f32.mrb[0].mxu0
  %v253 = vadd.f32 %v64, %v252
  %254 = vmatprep.mubr.bf16.mxu0 0
  %255 = vmatmul.mubr.bf16.gmra.mrb[0].mxu0 %v162
  %v256 = vpop.f32.mrb[0].mxu0
  %v257 = vadd.f32 %v60, %v256
  %v258 = vpop.f32.mrb[0].mxu0
  %v259 = vadd.f32 %v64, %v258
  %v260 = vpop.f32.mrb[0].mxu0
  %v261 = vadd.f32 %v60, %v260
  %v262 = vpop.f32.mrb[0].mxu0
  %v263 = vadd.f32 %v64, %v262
  %264 = vmatprep.mubr.bf16.mxu0 0
  %265 = vmatmul.mubr.bf16.gmra.mrb[0].mxu0 %v165
  %v266 = vpop.f32.mrb[0].mxu0
  %v267 = vadd.f32 %v60, %v266
  %v268 = vpop.f32.mrb[0].mxu0
  %v269 = vadd.f32 %v64, %v268
  %v270 = vpop.f32.mrb[0].mxu0
  %v271 = vadd.f32 %v60, %v270
  %v272 = vpop.f32.mrb[0].mxu0
  %v273 = vadd.f32 %v64, %v272
  %274 = vmatprep.mubr.bf16.mxu0 0
  %275 = vmatmul.mubr.bf16.gmra.mrb[0].mxu0 %v168
  %v276 = vpop.f32.mrb[0].mxu0
  %v277 = vadd.f32 %v60, %v276
  %v278 = vpop.f32.mrb[0].mxu0
  %v279 = vadd.f32 %v64, %v278
  %v280 = vpop.f32.mrb[0].mxu0
  %v281 = vadd.f32 %v60, %v280
  %v282 = vpop.f32.mrb[0].mxu0
  %v283 = vadd.f32 %v64, %v282
  %284 = vmatprep.mubr.bf16.mxu0 0
  %285 = vmatmul.mubr.bf16.gmra.mrb[0].mxu0 %v171
  %v286 = vpop.f32.mrb[0].mxu0
  %v287 = vadd.f32 %v60, %v286
  %v288 = vpop.f32.mrb[0].mxu0
  %v289 = vadd.f32 %v64, %v288
  %v290 = vpop.f32.mrb[0].mxu0
  %v291 = vadd.f32 %v60, %v290
  %v292 = vpop.f32.mrb[0].mxu0
  %v293 = vadd.f32 %v64, %v292
  %294 = vmatprep.mubr.bf16.mxu0 0
  %295 = vmatmul.mubr.bf16.gmra.mrb[0].mxu0 %v174
  %v296 = vpop.f32.mrb[0].mxu0
  %v297 = vadd.f32 %v60, %v296
  %v298 = vpop.f32.mrb[0].mxu0
  %v299 = vadd.f32 %v64, %v298
  %v300 = vpop.f32.mrb[0].mxu0
  %v301 = vadd.f32 %v60, %v300
  %v302 = vpop.f32.mrb[0].mxu0
  %v303 = vadd.f32 %v64, %v302
  %304 = vmatprep.mubr.bf16.mxu0 0
  %305 = vmatmul.mubr.bf16.gmra.mrb[0].mxu0 %v177
  %v306 = vpop.f32.mrb[0].mxu0
  %v307 = vadd.f32 %v60, %v306
  %v308 = vpop.f32.mrb[0].mxu0
  %v309 = vadd.f32 %v64, %v308
  %v310 = vpop.f32.mrb[0].mxu0
  %v311 = vadd.f32 %v60, %v310
  %v312 = vpop.f32.mrb[0].mxu0
  %v313 = vadd.f32 %v64, %v312
  %314 = vmatprep.mubr.bf16.mxu0 0
  %315 = vmatmul.mubr.bf16.gmra.mrb[0].mxu0 %v180
  %v316 = vpop.f32.mrb[0].mxu0
  %v317 = vadd.f32 %v60, %v316
  %v318 = vpop.f32.mrb[0].mxu0
  %v319 = vadd.f32 %v64, %v318
  %v320 = vpop.f32.mrb[0].mxu0
  %v321 = vadd.f32 %v60, %v320
  %v322 = vpop.f32.mrb[0].mxu0
  %v323 = vadd.f32 %v64, %v322
  %324 = vdwg.mxu0
  %325 = vmatprep.subr.bf16.mxu0 0
  %326 = vmatpush1.bf16.msra.mxu0 %v144
  %327 = vmatprep.subr.bf16.mxu0 0
  %328 = vmatpush1.bf16.msra.mxu0 %v190
  %329 = vmatprep.subr.bf16.mxu0 0
  %330 = vmatpush1.bf16.msra.mxu0 0
  %331 = vmatprep.subr.bf16.mxu0 0
  %332 = vmatpush1.bf16.msra.mxu0 0
  %333 = vmatprep.subr.bf16.mxu0 0
  %334 = vmatpush1.bf16.msra.mxu0 0
  %335 = vmatprep.subr.bf16.mxu0 0
  %336 = vmatpush1.bf16.msra.mxu0 0
  %337 = vmatprep.subr.bf16.mxu0 0
  %338 = vmatpush1.bf16.msra.mxu0 0
  %339 = vmatprep.subr.bf16.mxu0 0
  %340 = vmatpush1.bf16.msra.mxu0 0
  %341 = vmatprep.subr.bf16.mxu0 0
  %342 = vmatpush1.bf16.msra.mxu0 0
  %343 = vmatprep.subr.bf16.mxu0 0
  %344 = vmatpush1.bf16.msra.mxu0 0
  %345 = vmatprep.subr.bf16.mxu0 0
  %346 = vmatpush1.bf16.msra.mxu0 0
  %347 = vmatprep.subr.bf16.mxu0 0
  %348 = vmatpush1.bf16.msra.mxu0 0
  %349 = vmatprep.subr.bf16.mxu0 0
  %350 = vmatpush1.bf16.msra.mxu0 0
  %351 = vmatprep.subr.bf16.mxu0 0
  %352 = vmatpush1.bf16.msra.mxu0 0
  %353 = vmatprep.subr.bf16.mxu0 0
  %354 = vmatpush1.bf16.msra.mxu0 0
  %355 = vmatprep.subr.bf16.mxu0 0
  %356 = vmatpush1.bf16.msra.mxu0 0
  %357 = vmatprep.mubr.bf16.mxu0 0
  %358 = vmatmul.mubr.bf16.gmra.mrb[0].mxu0 %v153
  %v359 = vpop.f32.mrb[0].mxu0
  %v360 = vadd.f32 %v68, %v359
  %v361 = vpop.f32.mrb[0].mxu0
  %v362 = vpop.f32.mrb[0].mxu0
  %v363 = vadd.f32 %v68, %v362
  %v364 = vpop.f32.mrb[0].mxu0
  %365 = vmatprep.mubr.bf16.mxu0 0
  %366 = vmatmul.mubr.bf16.gmra.mrb[0].mxu0 %v156
  %v367 = vpop.f32.mrb[0].mxu0
  %v368 = vadd.f32 %v68, %v367
  %v369 = vpop.f32.mrb[0].mxu0
  %v370 = vpop.f32.mrb[0].mxu0
  %v371 = vadd.f32 %v68, %v370
  %v372 = vpop.f32.mrb[0].mxu0
  %373 = vmatprep.mubr.bf16.mxu0 0
  %374 = vmatmul.mubr.bf16.gmra.mrb[0].mxu0 %v159
  %v375 = vpop.f32.mrb[0].mxu0
  %v376 = vadd.f32 %v68, %v375
  %v377 = vpop.f32.mrb[0].mxu0
  %v378 = vpop.f32.mrb[0].mxu0
  %v379 = vadd.f32 %v68, %v378
  %v380 = vpop.f32.mrb[0].mxu0
  %381 = vmatprep.mubr.bf16.mxu0 0
  %382 = vmatmul.mubr.bf16.gmra.mrb[0].mxu0 %v162
  %v383 = vpop.f32.mrb[0].mxu0
  %v384 = vadd.f32 %v68, %v383
  %v385 = vpop.f32.mrb[0].mxu0
  %v386 = vpop.f32.mrb[0].mxu0
  %v387 = vadd.f32 %v68, %v386
  %v388 = vpop.f32.mrb[0].mxu0
  %389 = vmatprep.mubr.bf16.mxu0 0
  %390 = vmatmul.mubr.bf16.gmra.mrb[0].mxu0 %v165
  %v391 = vpop.f32.mrb[0].mxu0
  %v392 = vadd.f32 %v68, %v391
  %v393 = vpop.f32.mrb[0].mxu0
  %v394 = vpop.f32.mrb[0].mxu0
  %v395 = vadd.f32 %v68, %v394
  %v396 = vpop.f32.mrb[0].mxu0
  %397 = vmatprep.mubr.bf16.mxu0 0
  %398 = vmatmul.mubr.bf16.gmra.mrb[0].mxu0 %v168
  %v399 = vpop.f32.mrb[0].mxu0
  %v400 = vadd.f32 %v68, %v399
  %v401 = vpop.f32.mrb[0].mxu0
  %v402 = vpop.f32.mrb[0].mxu0
  %v403 = vadd.f32 %v68, %v402
  %v404 = vpop.f32.mrb[0].mxu0
  %405 = vmatprep.mubr.bf16.mxu0 0
  %406 = vmatmul.mubr.bf16.gmra.mrb[0].mxu0 %v171
  %v407 = vpop.f32.mrb[0].mxu0
  %v408 = vadd.f32 %v68, %v407
  %v409 = vpop.f32.mrb[0].mxu0
  %v410 = vpop.f32.mrb[0].mxu0
  %v411 = vadd.f32 %v68, %v410
  %v412 = vpop.f32.mrb[0].mxu0
  %413 = vmatprep.mubr.bf16.mxu0 0
  %414 = vmatmul.mubr.bf16.gmra.mrb[0].mxu0 %v174
  %v415 = vpop.f32.mrb[0].mxu0
  %v416 = vadd.f32 %v68, %v415
  %v417 = vpop.f32.mrb[0].mxu0
  %v418 = vpop.f32.mrb[0].mxu0
  %v419 = vadd.f32 %v68, %v418
  %v420 = vpop.f32.mrb[0].mxu0
  %421 = vmatprep.mubr.bf16.mxu0 0
  %422 = vmatmul.mubr.bf16.gmra.mrb[0].mxu0 %v177
  %v423 = vpop.f32.mrb[0].mxu0
  %v424 = vadd.f32 %v68, %v423
  %v425 = vpop.f32.mrb[0].mxu0
  %v426 = vpop.f32.mrb[0].mxu0
  %v427 = vadd.f32 %v68, %v426
  %v428 = vpop.f32.mrb[0].mxu0
  %429 = vmatprep.mubr.bf16.mxu0 0
  %430 = vmatmul.mubr.bf16.gmra.mrb[0].mxu0 %v180
  %v431 = vpop.f32.mrb[0].mxu0
  %v432 = vadd.f32 %v68, %v431
  %v433 = vpop.f32.mrb[0].mxu0
  %v434 = vpop.f32.mrb[0].mxu0
  %v435 = vadd.f32 %v68, %v434
  %v436 = vpop.f32.mrb[0].mxu0
  %437 = vdwg.mxu0
  %v438 = vmax.f32 %v227, %v277
  %v439 = vmax.f32 %v229, %v279
  %v440 = vmax.f32 %v360, %v400
  %v441 = vmax.f32 %v231, %v281
  %v442 = vmax.f32 %v233, %v283
  %v443 = vmax.f32 %v363, %v403
  %v444 = vmax.f32 %v237, %v287
  %v445 = vmax.f32 %v239, %v289
  %v446 = vmax.f32 %v368, %v408
  %v447 = vmax.f32 %v241, %v291
  %v448 = vmax.f32 %v243, %v293
  %v449 = vmax.f32 %v371, %v411
  %v450 = vmax.f32 %v247, %v297
  %v451 = vmax.f32 %v249, %v299
  %v452 = vmax.f32 %v376, %v416
  %v453 = vmax.f32 %v251, %v301
  %v454 = vmax.f32 %v253, %v303
  %v455 = vmax.f32 %v379, %v419
  %v456 = vmax.f32 %v257, %v307
  %v457 = vmax.f32 %v259, %v309
  %v458 = vmax.f32 %v384, %v424
  %v459 = vmax.f32 %v261, %v311
  %v460 = vmax.f32 %v263, %v313
  %v461 = vmax.f32 %v387, %v427
  %v462 = vmax.f32 %v267, %v317
  %v463 = vmax.f32 %v269, %v319
  %v464 = vmax.f32 %v392, %v432
  %v465 = vmax.f32 %v271, %v321
  %v466 = vmax.f32 %v273, %v323
  %v467 = vmax.f32 %v395, %v435
  %v468 = vmax.f32 %v438, 0.0
  %v469 = vmax.f32 %v439, 0.0
  %v470 = vmax.f32 %v440, 0.0
  %v471 = vmax.f32 %v441, 0.0
  %v472 = vmax.f32 %v442, 0.0
  %v473 = vmax.f32 %v443, 0.0
  %v474 = vmax.f32 %v444, 0.0
  %v475 = vmax.f32 %v445, 0.0
  %v476 = vmax.f32 %v446, 0.0
  %v477 = vmax.f32 %v447, 0.0
  %v478 = vmax.f32 %v448, 0.0
  %v479 = vmax.f32 %v449, 0.0
  %v480 = vmax.f32 %v450, 0.0
  %v481 = vmax.f32 %v451, 0.0
  %v482 = vmax.f32 %v452, 0.0
  %v483 = vmax.f32 %v453, 0.0
  %v484 = vmax.f32 %v454, 0.0
  %v485 = vmax.f32 %v455, 0.0
  %v486 = vmax.f32 %v456, 0.0
  %v487 = vmax.f32 %v457, 0.0
  %v488 = vmax.f32 %v458, 0.0
  %v489 = vmax.f32 %v459, 0.0
  %v490 = vmax.f32 %v460, 0.0
  %v491 = vmax.f32 %v461, 0.0
  %v492 = vmax.f32 %v462, 0.0
  %v493 = vmax.f32 %v463, 0.0
  %v494 = vmax.f32 %v464, 0.0
  %v495 = vmax.f32 %v465, 0.0
  %v496 = vmax.f32 %v466, 0.0
  %v497 = vmax.f32 %v467, 0.0
  %v498 = vpack.c.bf16 %v468, %v468
  %v499 = vpack.c.bf16 %v469, %v469
  %v500 = vpack.c.bf16 %v470, %v470
  %v501 = vpack.c.bf16 %v471, %v471
  %v502 = vpack.c.bf16 %v472, %v472
  %v503 = vpack.c.bf16 %v473, %v473
  %v504 = vpack.c.bf16 %v474, %v474
  %v505 = vpack.c.bf16 %v475, %v475
  %v506 = vpack.c.bf16 %v476, %v476
  %v507 = vpack.c.bf16 %v477, %v477
  %v508 = vpack.c.bf16 %v478, %v478
  %v509 = vpack.c.bf16 %v479, %v479
  %v510 = vpack.c.bf16 %v480, %v480
  %v511 = vpack.c.bf16 %v481, %v481
  %v512 = vpack.c.bf16 %v482, %v482
  %v513 = vpack.c.bf16 %v483, %v483
  %v514 = vpack.c.bf16 %v484, %v484
  %v515 = vpack.c.bf16 %v485, %v485
  %v516 = vpack.c.bf16 %v486, %v486
  %v517 = vpack.c.bf16 %v487, %v487
  %v518 = vpack.c.bf16 %v488, %v488
  %v519 = vpack.c.bf16 %v489, %v489
  %v520 = vpack.c.bf16 %v490, %v490
  %v521 = vpack.c.bf16 %v491, %v491
  %v522 = vpack.c.bf16 %v492, %v492
  %v523 = vpack.c.bf16 %v493, %v493
  %v524 = vpack.c.bf16 %v494, %v494
  %v525 = vpack.c.bf16 %v495, %v495
  %v526 = vpack.c.bf16 %v496, %v496
  %v527 = vpack.c.bf16 %v497, %v497
  %v528 = vld [vmem:[%s4] sm:$0xf]
  %v529 = vld [vmem:[%s4 + $0x4] sm:$0xf]
  %v530 = vld [vmem:[%s4 + $0x8] sm:$0xf]
  %v531 = vld [vmem:[%s4 + $0xc] sm:$0xf]
  %v532 = vld [vmem:[%s4 + $0x10] sm:$0xf]
  %v533 = vld [vmem:[%s4 + $0x14] sm:$0xf]
  %v534 = vld [vmem:[%s4 + $0x18] sm:$0xf]
  %v535 = vld [vmem:[%s4 + $0x1c] sm:$0xf]
  %v536 = vld [vmem:[%s4 + $0x20] sm:$0xf]
  %v537 = vld [vmem:[%s4 + $0x24] sm:$0xf]
  %v538 = vld [vmem:[%s4 + $0x28] sm:$0xf]
  %v539 = vld [vmem:[%s4 + $0x2c] sm:$0xf]
  %v540 = vld [vmem:[%s4 + $0x30] sm:$0xf]
  %v541 = vld [vmem:[%s4 + $0x34] sm:$0xf]
  %v542 = vld [vmem:[%s4 + $0x38] sm:$0xf]
  %v543 = vld [vmem:[%s4 + $0x3c] sm:$0xf]
  %v544 = vld [vmem:[%s4 + $0x40] sm:$0xf]
  %v545 = vld [vmem:[%s4 + $0x44] sm:$0xf]
  %v546 = vld [vmem:[%s4 + $0x48] sm:$0xf]
  %v547 = vld [vmem:[%s4 + $0x4c] sm:$0xf]
  %v548 = vld [vmem:[%s4 + $0x50] sm:$0xf]
  %v549 = vld [vmem:[%s4 + $0x54] sm:$0xf]
  %v550 = vld [vmem:[%s4 + $0x58] sm:$0xf]
  %v551 = vld [vmem:[%s4 + $0x5c] sm:$0xf]
  %v552 = vld [vmem:[%s4 + $0x60] sm:$0xf]
  %v553 = vld [vmem:[%s4 + $0x64] sm:$0xf]
  %v554 = vld [vmem:[%s4 + $0x68] sm:$0xf]
  %v555 = vld [vmem:[%s4 + $0x6c] sm:$0xf]
  %v556 = vld [vmem:[%s4 + $0x70] sm:$0xf]
  %v557 = vld [vmem:[%s4 + $0x74] sm:$0xf]
  %v558 = vld [vmem:[%s4 + $0x78] sm:$0xf]
  %v559 = vld [vmem:[%s4 + $0x7c] sm:$0xf]
  %v560 = vld [vmem:[%s4 + $0x80] sm:$0x3]
  %v561 = vld [vmem:[%s4 + $0x84] sm:$0xf]
  %v562 = vld [vmem:[%s4 + $0x88] sm:$0xf]
  %v563 = vld [vmem:[%s4 + $0x8c] sm:$0xf]
  %v564 = vld [vmem:[%s4 + $0x90] sm:$0xf]
  %v565 = vld [vmem:[%s4 + $0x94] sm:$0xf]
  %v566 = vld [vmem:[%s4 + $0x98] sm:$0xf]
  %v567 = vld [vmem:[%s4 + $0x9c] sm:$0xf]
  %v568 = vld [vmem:[%s4 + $0xa0] sm:$0xf]
  %v569 = vld [vmem:[%s4 + $0xa4] sm:$0xf]
  %v570 = vld [vmem:[%s4 + $0xa8] sm:$0xf]
  %v571 = vld [vmem:[%s4 + $0xac] sm:$0xf]
  %v572 = vld [vmem:[%s4 + $0xb0] sm:$0xf]
  %v573 = vld [vmem:[%s4 + $0xb4] sm:$0xf]
  %v574 = vld [vmem:[%s4 + $0xb8] sm:$0xf]
  %v575 = vld [vmem:[%s4 + $0xbc] sm:$0xf]
  %v576 = vld [vmem:[%s4 + $0xc0] sm:$0xf]
  %v577 = vld [vmem:[%s4 + $0xc4] sm:$0xf]
  %v578 = vld [vmem:[%s4 + $0xc8] sm:$0xf]
  %v579 = vld [vmem:[%s4 + $0xcc] sm:$0xf]
  %v580 = vld [vmem:[%s4 + $0xd0] sm:$0xf]
  %v581 = vld [vmem:[%s4 + $0xd4] sm:$0xf]
  %v582 = vld [vmem:[%s4 + $0xd8] sm:$0xf]
  %v583 = vld [vmem:[%s4 + $0xdc] sm:$0xf]
  %v584 = vld [vmem:[%s4 + $0xe0] sm:$0xf]
  %v585 = vld [vmem:[%s4 + $0xe4] sm:$0xf]
  %v586 = vld [vmem:[%s4 + $0xe8] sm:$0xf]
  %v587 = vld [vmem:[%s4 + $0xec] sm:$0xf]
  %v588 = vld [vmem:[%s4 + $0xf0] sm:$0xf]
  %v589 = vld [vmem:[%s4 + $0xf4] sm:$0xf]
  %v590 = vld [vmem:[%s4 + $0xf8] sm:$0xf]
  %v591 = vld [vmem:[%s4 + $0xfc] sm:$0xf]
  %v592 = vld [vmem:[%s4 + $0x100] sm:$0xf]
  %v593 = vld [vmem:[%s4 + $0x104] sm:$0x3]
  %v594 = vld [vmem:[%s4 + $0x108] sm:$0xf]
  %v595 = vld [vmem:[%s4 + $0x10c] sm:$0xf]
  %v596 = vld [vmem:[%s4 + $0x110] sm:$0xf]
  %v597 = vld [vmem:[%s4 + $0x114] sm:$0xf]
  %v598 = vld [vmem:[%s4 + $0x118] sm:$0xf]
  %v599 = vld [vmem:[%s4 + $0x11c] sm:$0xf]
  %v600 = vld [vmem:[%s4 + $0x120] sm:$0xf]
  %v601 = vld [vmem:[%s4 + $0x124] sm:$0xf]
  %v602 = vld [vmem:[%s4 + $0x128] sm:$0xf]
  %v603 = vld [vmem:[%s4 + $0x12c] sm:$0xf]
  %v604 = vld [vmem:[%s4 + $0x130] sm:$0xf]
  %v605 = vld [vmem:[%s4 + $0x134] sm:$0xf]
  %v606 = vld [vmem:[%s4 + $0x138] sm:$0xf]
  %v607 = vld [vmem:[%s4 + $0x13c] sm:$0xf]
  %v608 = vld [vmem:[%s4 + $0x140] sm:$0xf]
  %v609 = vld [vmem:[%s4 + $0x144] sm:$0xf]
  %v610 = vld [vmem:[%s4 + $0x148] sm:$0xf]
  %v611 = vld [vmem:[%s4 + $0x14c] sm:$0xf]
  %v612 = vld [vmem:[%s4 + $0x150] sm:$0xf]
  %v613 = vld [vmem:[%s4 + $0x154] sm:$0xf]
  %v614 = vld [vmem:[%s4 + $0x158] sm:$0xf]
  %v615 = vld [vmem:[%s4 + $0x15c] sm:$0xf]
  %v616 = vld [vmem:[%s4 + $0x160] sm:$0xf]
  %v617 = vld [vmem:[%s4 + $0x164] sm:$0xf]
  %v618 = vld [vmem:[%s4 + $0x168] sm:$0xf]
  %v619 = vld [vmem:[%s4 + $0x16c] sm:$0xf]
  %v620 = vld [vmem:[%s4 + $0x170] sm:$0xf]
  %v621 = vld [vmem:[%s4 + $0x174] sm:$0xf]
  %v622 = vld [vmem:[%s4 + $0x178] sm:$0xf]
  %v623 = vld [vmem:[%s4 + $0x17c] sm:$0xf]
  %v624 = vld [vmem:[%s4 + $0x180] sm:$0xf]
  %v625 = vld [vmem:[%s4 + $0x184] sm:$0xf]
  %v626 = vld [vmem:[%s4 + $0x188] sm:$0x3]
  %v627 = vld [vmem:[%s4 + $0x18c] sm:$0xf]
  %v628 = vld [vmem:[%s4 + $0x190] sm:$0xf]
  %v629 = vld [vmem:[%s4 + $0x194] sm:$0xf]
  %v630 = vld [vmem:[%s4 + $0x198] sm:$0xf]
  %v631 = vld [vmem:[%s4 + $0x19c] sm:$0xf]
  %v632 = vld [vmem:[%s4 + $0x1a0] sm:$0xf]
  %v633 = vld [vmem:[%s4 + $0x1a4] sm:$0xf]
  %v634 = vld [vmem:[%s4 + $0x1a8] sm:$0xf]
  %v635 = vld [vmem:[%s4 + $0x1ac] sm:$0xf]
  %v636 = vld [vmem:[%s4 + $0x1b0] sm:$0xf]
  %v637 = vld [vmem:[%s4 + $0x1b4] sm:$0xf]
  %v638 = vld [vmem:[%s4 + $0x1b8] sm:$0xf]
  %v639 = vld [vmem:[%s4 + $0x1bc] sm:$0xf]
  %v640 = vld [vmem:[%s4 + $0x1c0] sm:$0xf]
  %v641 = vld [vmem:[%s4 + $0x1c4] sm:$0xf]
  %v642 = vld [vmem:[%s4 + $0x1c8] sm:$0xf]
  %v643 = vld [vmem:[%s4 + $0x1cc] sm:$0xf]
  %v644 = vld [vmem:[%s4 + $0x1d0] sm:$0xf]
  %v645 = vld [vmem:[%s4 + $0x1d4] sm:$0xf]
  %v646 = vld [vmem:[%s4 + $0x1d8] sm:$0xf]
  %v647 = vld [vmem:[%s4 + $0x1dc] sm:$0xf]
  %v648 = vld [vmem:[%s4 + $0x1e0] sm:$0xf]
  %v649 = vld [vmem:[%s4 + $0x1e4] sm:$0xf]
  %v650 = vld [vmem:[%s4 + $0x1e8] sm:$0xf]
  %v651 = vld [vmem:[%s4 + $0x1ec] sm:$0xf]
  %v652 = vld [vmem:[%s4 + $0x1f0] sm:$0xf]
  %v653 = vld [vmem:[%s4 + $0x1f4] sm:$0xf]
  %v654 = vld [vmem:[%s4 + $0x1f8] sm:$0xf]
  %v655 = vld [vmem:[%s4 + $0x1fc] sm:$0xf]
  %v656 = vld [vmem:[%s4 + $0x200] sm:$0xf]
  %v657 = vld [vmem:[%s4 + $0x204] sm:$0xf]
  %v658 = vld [vmem:[%s4 + $0x208] sm:$0xf]
  %v659 = vld [vmem:[%s4 + $0x20c] sm:$0x3]
  %v660 = vld [vmem:[%s4 + $0x210] sm:$0xf]
  %v661 = vld [vmem:[%s4 + $0x214] sm:$0xf]
  %v662 = vld [vmem:[%s4 + $0x218] sm:$0xf]
  %v663 = vld [vmem:[%s4 + $0x21c] sm:$0xf]
  %v664 = vld [vmem:[%s4 + $0x220] sm:$0xf]
  %v665 = vld [vmem:[%s4 + $0x224] sm:$0xf]
  %v666 = vld [vmem:[%s4 + $0x228] sm:$0xf]
  %v667 = vld [vmem:[%s4 + $0x22c] sm:$0xf]
  %v668 = vld [vmem:[%s4 + $0x230] sm:$0xf]
  %v669 = vld [vmem:[%s4 + $0x234] sm:$0xf]
  %v670 = vld [vmem:[%s4 + $0x238] sm:$0xf]
  %v671 = vld [vmem:[%s4 + $0x23c] sm:$0xf]
  %v672 = vld [vmem:[%s4 + $0x240] sm:$0xf]
  %v673 = vld [vmem:[%s4 + $0x244] sm:$0xf]
  %v674 = vld [vmem:[%s4 + $0x248] sm:$0xf]
  %v675 = vld [vmem:[%s4 + $0x24c] sm:$0xf]
  %v676 = vld [vmem:[%s4 + $0x250] sm:$0xf]
  %v677 = vld [vmem:[%s4 + $0x254] sm:$0xf]
  %v678 = vld [vmem:[%s4 + $0x258] sm:$0xf]
  %v679 = vld [vmem:[%s4 + $0x25c] sm:$0xf]
  %v680 = vld [vmem:[%s4 + $0x260] sm:$0xf]
  %v681 = vld [vmem:[%s4 + $0x264] sm:$0xf]
  %v682 = vld [vmem:[%s4 + $0x268] sm:$0xf]
  %v683 = vld [vmem:[%s4 + $0x26c] sm:$0xf]
  %v684 = vld [vmem:[%s4 + $0x270] sm:$0xf]
  %v685 = vld [vmem:[%s4 + $0x274] sm:$0xf]
  %v686 = vld [vmem:[%s4 + $0x278] sm:$0xf]
  %v687 = vld [vmem:[%s4 + $0x27c] sm:$0xf]
  %v688 = vld [vmem:[%s4 + $0x280] sm:$0xf]
  %v689 = vld [vmem:[%s4 + $0x284] sm:$0xf]
  %v690 = vld [vmem:[%s4 + $0x288] sm:$0xf]
  %v691 = vld [vmem:[%s4 + $0x28c] sm:$0xf]
  %v692 = vld [vmem:[%s4 + $0x290] sm:$0x3]
  %v693 = vld [vmem:[%s4 + $0x294] sm:$0xf]
  %v694 = vld [vmem:[%s4 + $0x298] sm:$0xf]
  %v695 = vld [vmem:[%s4 + $0x29c] sm:$0xf]
  %v696 = vld [vmem:[%s4 + $0x2a0] sm:$0xf]
  %v697 = vld [vmem:[%s4 + $0x2a4] sm:$0xf]
  %v698 = vld [vmem:[%s4 + $0x2a8] sm:$0xf]
  %v699 = vld [vmem:[%s4 + $0x2ac] sm:$0xf]
  %v700 = vld [vmem:[%s4 + $0x2b0] sm:$0xf]
  %v701 = vld [vmem:[%s4 + $0x2b4] sm:$0xf]
  %v702 = vld [vmem:[%s4 + $0x2b8] sm:$0xf]
  %v703 = vld [vmem:[%s4 + $0x2bc] sm:$0xf]
  %v704 = vld [vmem:[%s4 + $0x2c0] sm:$0xf]
  %v705 = vld [vmem:[%s4 + $0x2c4] sm:$0xf]
  %v706 = vld [vmem:[%s4 + $0x2c8] sm:$0xf]
  %v707 = vld [vmem:[%s4 + $0x2cc] sm:$0xf]
  %v708 = vld [vmem:[%s4 + $0x2d0] sm:$0xf]
  %v709 = vld [vmem:[%s4 + $0x2d4] sm:$0xf]
  %v710 = vld [vmem:[%s4 + $0x2d8] sm:$0xf]
  %v711 = vld [vmem:[%s4 + $0x2dc] sm:$0xf]
  %v712 = vld [vmem:[%s4 + $0x2e0] sm:$0xf]
  %v713 = vld [vmem:[%s4 + $0x2e4] sm:$0xf]
  %v714 = vld [vmem:[%s4 + $0x2e8] sm:$0xf]
  %v715 = vld [vmem:[%s4 + $0x2ec] sm:$0xf]
  %v716 = vld [vmem:[%s4 + $0x2f0] sm:$0xf]
  %v717 = vld [vmem:[%s4 + $0x2f4] sm:$0xf]
  %v718 = vld [vmem:[%s4 + $0x2f8] sm:$0xf]
  %v719 = vld [vmem:[%s4 + $0x2fc] sm:$0xf]
  %v720 = vld [vmem:[%s4 + $0x300] sm:$0xf]
  %v721 = vld [vmem:[%s4 + $0x304] sm:$0xf]
  %v722 = vld [vmem:[%s4 + $0x308] sm:$0xf]
  %v723 = vld [vmem:[%s4 + $0x30c] sm:$0xf]
  %v724 = vld [vmem:[%s4 + $0x310] sm:$0xf]
  %v725 = vld [vmem:[%s4 + $0x314] sm:$0x3]
  %v726 = vld [vmem:[%s4 + $0x318] sm:$0xf]
  %v727 = vld [vmem:[%s4 + $0x31c] sm:$0xf]
  %v728 = vld [vmem:[%s4 + $0x320] sm:$0xf]
  %v729 = vld [vmem:[%s4 + $0x324] sm:$0xf]
  %v730 = vld [vmem:[%s4 + $0x328] sm:$0xf]
  %v731 = vld [vmem:[%s4 + $0x32c] sm:$0xf]
  %v732 = vld [vmem:[%s4 + $0x330] sm:$0xf]
  %v733 = vld [vmem:[%s4 + $0x334] sm:$0xf]
  %v734 = vld [vmem:[%s4 + $0x338] sm:$0xf]
  %v735 = vld [vmem:[%s4 + $0x33c] sm:$0xf]
  %v736 = vld [vmem:[%s4 + $0x340] sm:$0xf]
  %v737 = vld [vmem:[%s4 + $0x344] sm:$0xf]
  %v738 = vld [vmem:[%s4 + $0x348] sm:$0xf]
  %v739 = vld [vmem:[%s4 + $0x34c] sm:$0xf]
  %v740 = vld [vmem:[%s4 + $0x350] sm:$0xf]
  %v741 = vld [vmem:[%s4 + $0x354] sm:$0xf]
  %v742 = vld [vmem:[%s4 + $0x358] sm:$0xf]
  %v743 = vld [vmem:[%s4 + $0x35c] sm:$0xf]
  %v744 = vld [vmem:[%s4 + $0x360] sm:$0xf]
  %v745 = vld [vmem:[%s4 + $0x364] sm:$0xf]
  %v746 = vld [vmem:[%s4 + $0x368] sm:$0xf]
  %v747 = vld [vmem:[%s4 + $0x36c] sm:$0xf]
  %v748 = vld [vmem:[%s4 + $0x370] sm:$0xf]
  %v749 = vld [vmem:[%s4 + $0x374] sm:$0xf]
  %v750 = vld [vmem:[%s4 + $0x378] sm:$0xf]
  %v751 = vld [vmem:[%s4 + $0x37c] sm:$0xf]
  %v752 = vld [vmem:[%s4 + $0x380] sm:$0xf]
  %v753 = vld [vmem:[%s4 + $0x384] sm:$0xf]
  %v754 = vld [vmem:[%s4 + $0x388] sm:$0xf]
  %v755 = vld [vmem:[%s4 + $0x38c] sm:$0xf]
  %v756 = vld [vmem:[%s4 + $0x390] sm:$0xf]
  %v757 = vld [vmem:[%s4 + $0x394] sm:$0xf]
  %v758 = vld [vmem:[%s4 + $0x398] sm:$0x3]
  %v759 = vld [vmem:[%s4 + $0x39c] sm:$0xf]
  %v760 = vld [vmem:[%s4 + $0x3a0] sm:$0xf]
  %v761 = vld [vmem:[%s4 + $0x3a4] sm:$0xf]
  %v762 = vld [vmem:[%s4 + $0x3a8] sm:$0xf]
  %v763 = vld [vmem:[%s4 + $0x3ac] sm:$0xf]
  %v764 = vld [vmem:[%s4 + $0x3b0] sm:$0xf]
  %v765 = vld [vmem:[%s4 + $0x3b4] sm:$0xf]
  %v766 = vld [vmem:[%s4 + $0x3b8] sm:$0xf]
  %v767 = vld [vmem:[%s4 + $0x3bc] sm:$0xf]
  %v768 = vld [vmem:[%s4 + $0x3c0] sm:$0xf]
  %v769 = vld [vmem:[%s4 + $0x3c4] sm:$0xf]
  %v770 = vld [vmem:[%s4 + $0x3c8] sm:$0xf]
  %v771 = vld [vmem:[%s4 + $0x3cc] sm:$0xf]
  %v772 = vld [vmem:[%s4 + $0x3d0] sm:$0xf]
  %v773 = vld [vmem:[%s4 + $0x3d4] sm:$0xf]
  %v774 = vld [vmem:[%s4 + $0x3d8] sm:$0xf]
  %v775 = vld [vmem:[%s4 + $0x3dc] sm:$0xf]
  %v776 = vld [vmem:[%s4 + $0x3e0] sm:$0xf]
  %v777 = vld [vmem:[%s4 + $0x3e4] sm:$0xf]
  %v778 = vld [vmem:[%s4 + $0x3e8] sm:$0xf]
  %v779 = vld [vmem:[%s4 + $0x3ec] sm:$0xf]
  %v780 = vld [vmem:[%s4 + $0x3f0] sm:$0xf]
  %v781 = vld [vmem:[%s4 + $0x3f4] sm:$0xf]
  %v782 = vld [vmem:[%s4 + $0x3f8] sm:$0xf]
  %v783 = vld [vmem:[%s4 + $0x3fc] sm:$0xf]
  %v784 = vld [vmem:[%s4 + $0x400] sm:$0xf]
  %v785 = vld [vmem:[%s4 + $0x404] sm:$0xf]
  %v786 = vld [vmem:[%s4 + $0x408] sm:$0xf]
  %v787 = vld [vmem:[%s4 + $0x40c] sm:$0xf]
  %v788 = vld [vmem:[%s4 + $0x410] sm:$0xf]
  %v789 = vld [vmem:[%s4 + $0x414] sm:$0xf]
  %v790 = vld [vmem:[%s4 + $0x418] sm:$0xf]
  %v791 = vld [vmem:[%s4 + $0x41c] sm:$0x3]
  %v792 = vld [vmem:[%s4 + $0x420] sm:$0xf]
  %v793 = vld [vmem:[%s4 + $0x424] sm:$0xf]
  %v794 = vld [vmem:[%s4 + $0x428] sm:$0xf]
  %v795 = vld [vmem:[%s4 + $0x42c] sm:$0xf]
  %v796 = vld [vmem:[%s4 + $0x430] sm:$0xf]
  %v797 = vld [vmem:[%s4 + $0x434] sm:$0xf]
  %v798 = vld [vmem:[%s4 + $0x438] sm:$0xf]
  %v799 = vld [vmem:[%s4 + $0x43c] sm:$0xf]
  %v800 = vld [vmem:[%s4 + $0x440] sm:$0xf]
  %v801 = vld [vmem:[%s4 + $0x444] sm:$0xf]
  %v802 = vld [vmem:[%s4 + $0x448] sm:$0xf]
  %v803 = vld [vmem:[%s4 + $0x44c] sm:$0xf]
  %v804 = vld [vmem:[%s4 + $0x450] sm:$0xf]
  %v805 = vld [vmem:[%s4 + $0x454] sm:$0xf]
  %v806 = vld [vmem:[%s4 + $0x458] sm:$0xf]
  %v807 = vld [vmem:[%s4 + $0x45c] sm:$0xf]
  %v808 = vld [vmem:[%s4 + $0x460] sm:$0xf]
  %v809 = vld [vmem:[%s4 + $0x464] sm:$0xf]
  %v810 = vld [vmem:[%s4 + $0x468] sm:$0xf]
  %v811 = vld [vmem:[%s4 + $0x46c] sm:$0xf]
  %v812 = vld [vmem:[%s4 + $0x470] sm:$0xf]
  %v813 = vld [vmem:[%s4 + $0x474] sm:$0xf]
  %v814 = vld [vmem:[%s4 + $0x478] sm:$0xf]
  %v815 = vld [vmem:[%s4 + $0x47c] sm:$0xf]
  %v816 = vld [vmem:[%s4 + $0x480] sm:$0xf]
  %v817 = vld [vmem:[%s4 + $0x484] sm:$0xf]
  %v818 = vld [vmem:[%s4 + $0x488] sm:$0xf]
  %v819 = vld [vmem:[%s4 + $0x48c] sm:$0xf]
  %v820 = vld [vmem:[%s4 + $0x490] sm:$0xf]
  %v821 = vld [vmem:[%s4 + $0x494] sm:$0xf]
  %v822 = vld [vmem:[%s4 + $0x498] sm:$0xf]
  %v823 = vld [vmem:[%s4 + $0x49c] sm:$0xf]
  %v824 = vld [vmem:[%s4 + $0x4a0] sm:$0x3]
  %v825 = vld [vmem:[%s4 + $0x4a4] sm:$0xf]
  %v826 = vld [vmem:[%s4 + $0x4a8] sm:$0xf]
  %v827 = vld [vmem:[%s4 + $0x4ac] sm:$0xf]
  %v828 = vld [vmem:[%s4 + $0x4b0] sm:$0xf]
  %v829 = vld [vmem:[%s4 + $0x4b4] sm:$0xf]
  %v830 = vld [vmem:[%s4 + $0x4b8] sm:$0xf]
  %v831 = vld [vmem:[%s4 + $0x4bc] sm:$0xf]
  %v832 = vld [vmem:[%s4 + $0x4c0] sm:$0xf]
  %v833 = vld [vmem:[%s4 + $0x4c4] sm:$0xf]
  %v834 = vld [vmem:[%s4 + $0x4c8] sm:$0xf]
  %v835 = vld [vmem:[%s4 + $0x4cc] sm:$0xf]
  %v836 = vld [vmem:[%s4 + $0x4d0] sm:$0xf]
  %v837 = vld [vmem:[%s4 + $0x4d4] sm:$0xf]
  %v838 = vld [vmem:[%s4 + $0x4d8] sm:$0xf]
  %v839 = vld [vmem:[%s4 + $0x4dc] sm:$0xf]
  %v840 = vld [vmem:[%s4 + $0x4e0] sm:$0xf]
  %v841 = vld [vmem:[%s4 + $0x4e4] sm:$0xf]
  %v842 = vld [vmem:[%s4 + $0x4e8] sm:$0xf]
  %v843 = vld [vmem:[%s4 + $0x4ec] sm:$0xf]
  %v844 = vld [vmem:[%s4 + $0x4f0] sm:$0xf]
  %v845 = vld [vmem:[%s4 + $0x4f4] sm:$0xf]
  %v846 = vld [vmem:[%s4 + $0x4f8] sm:$0xf]
  %v847 = vld [vmem:[%s4 + $0x4fc] sm:$0xf]
  %v848 = vld [vmem:[%s4 + $0x500] sm:$0xf]
  %v849 = vld [vmem:[%s4 + $0x504] sm:$0xf]
  %v850 = vld [vmem:[%s4 + $0x508] sm:$0xf]
  %v851 = vld [vmem:[%s4 + $0x50c] sm:$0xf]
  %v852 = vld [vmem:[%s4 + $0x510] sm:$0xf]
  %v853 = vld [vmem:[%s4 + $0x514] sm:$0xf]
  %v854 = vld [vmem:[%s4 + $0x518] sm:$0xf]
  %v855 = vld [vmem:[%s4 + $0x51c] sm:$0xf]
  %v856 = vld [vmem:[%s4 + $0x520] sm:$0xf]
  %v857 = vld [vmem:[%s4 + $0x524] sm:$0x3]
  %v891 = vunpack.c.l.b16 %v528
  %v892 = vunpack.c.l.b16 %v529
  %v893 = vunpack.c.l.b16 %v530
  %v894 = vunpack.c.l.b16 %v531
  %v895 = vunpack.c.l.b16 %v532
  %v896 = vunpack.c.l.b16 %v533
  %v897 = vunpack.c.l.b16 %v534
  %v898 = vunpack.c.l.b16 %v535
  %v899 = vunpack.c.l.b16 %v536
  %v900 = vunpack.c.l.b16 %v537
  %v901 = vunpack.c.l.b16 %v538
  %v902 = vunpack.c.l.b16 %v539
  %v903 = vunpack.c.l.b16 %v540
  %v904 = vunpack.c.l.b16 %v541
  %v905 = vunpack.c.l.b16 %v542
  %v906 = vunpack.c.l.b16 %v543
  %v907 = vunpack.c.l.b16 %v544
  %v908 = vunpack.c.l.b16 %v545
  %v909 = vunpack.c.l.b16 %v546
  %v910 = vunpack.c.l.b16 %v547
  %v911 = vunpack.c.l.b16 %v548
  %v912 = vunpack.c.l.b16 %v549
  %v913 = vunpack.c.l.b16 %v550
  %v914 = vunpack.c.l.b16 %v551
  %v915 = vunpack.c.l.b16 %v552
  %v916 = vunpack.c.l.b16 %v553
  %v917 = vunpack.c.l.b16 %v554
  %v918 = vunpack.c.l.b16 %v555
  %v919 = vunpack.c.l.b16 %v556
  %v920 = vunpack.c.l.b16 %v557
  %v921 = vunpack.c.l.b16 %v558
  %v922 = vunpack.c.l.b16 %v559
  %v923 = vunpack.c.l.b16 %v560
  %v924 = vpack.c.b16 %v892, %v891
  %v925 = vpack.c.b16 %v894, %v893
  %v926 = vpack.c.b16 %v896, %v895
  %v927 = vpack.c.b16 %v898, %v897
  %v928 = vpack.c.b16 %v900, %v899
  %v929 = vpack.c.b16 %v902, %v901
  %v930 = vpack.c.b16 %v904, %v903
  %v931 = vpack.c.b16 %v906, %v905
  %v932 = vpack.c.b16 %v908, %v907
  %v933 = vpack.c.b16 %v910, %v909
  %v934 = vpack.c.b16 %v912, %v911
  %v935 = vpack.c.b16 %v914, %v913
  %v936 = vpack.c.b16 %v916, %v915
  %v937 = vpack.c.b16 %v918, %v917
  %v938 = vpack.c.b16 %v920, %v919
  %v939 = vpack.c.b16 %v922, %v921
  %v940 = vpack.c.b16 %v923, %v923
  %vm957 = vcmask 31744
  %v959 = vsel %vm957, %v500, 0
  %vm961 = vcmask 1041408
  %v963 = vsel %vm961, %v940, 0
  %965 = vmatprep.subr.bf16.mxu0 0
  %966 = vmatpush1.bf16.msra.mxu0 %v924
  %967 = vmatprep.subr.bf16.mxu0 0
  %968 = vmatpush1.bf16.msra.mxu0 %v925
  %969 = vmatprep.subr.bf16.mxu0 0
  %970 = vmatpush1.bf16.msra.mxu0 %v926
  %971 = vmatprep.subr.bf16.mxu0 0
  %972 = vmatpush1.bf16.msra.mxu0 %v927
  %973 = vmatprep.subr.bf16.mxu0 0
  %974 = vmatpush1.bf16.msra.mxu0 %v928
  %975 = vmatprep.subr.bf16.mxu0 0
  %976 = vmatpush1.bf16.msra.mxu0 %v929
  %977 = vmatprep.subr.bf16.mxu0 0
  %978 = vmatpush1.bf16.msra.mxu0 %v930
  %979 = vmatprep.subr.bf16.mxu0 0
  %980 = vmatpush1.bf16.msra.mxu0 %v931
  %981 = vmatprep.subr.bf16.mxu0 0
  %982 = vmatpush1.bf16.msra.mxu0 %v932
  %983 = vmatprep.subr.bf16.mxu0 0
  %984 = vmatpush1.bf16.msra.mxu0 %v933
  %985 = vmatprep.subr.bf16.mxu0 0
  %986 = vmatpush1.bf16.msra.mxu0 %v934
  %987 = vmatprep.subr.bf16.mxu0 0
  %988 = vmatpush1.bf16.msra.mxu0 %v935
  %989 = vmatprep.subr.bf16.mxu0 0
  %990 = vmatpush1.bf16.msra.mxu0 %v936
  %991 = vmatprep.subr.bf16.mxu0 0
  %992 = vmatpush1.bf16.msra.mxu0 %v937
  %993 = vmatprep.subr.bf16.mxu0 0
  %994 = vmatpush1.bf16.msra.mxu0 %v938
  %995 = vmatprep.subr.bf16.mxu0 0
  %996 = vmatpush1.bf16.msra.mxu0 %v939
  %997 = vmatprep.mubr.bf16.mxu0 %v499
  %998 = vmatmul.mubr.bf16.gmra.mrb[0].mxu0 %v498
  %v999 = vpop.f32.mrb[0].mxu0
  %v1000 = vadd.f32 0.0, %v999
  %v1001 = vpop.f32.mrb[0].mxu0
  %v1002 = vpop.f32.mrb[0].mxu0
  %v1003 = vpop.f32.mrb[0].mxu0
  %1004 = vdwg.mxu0
  %1005 = vmatprep.subr.bf16.mxu0 0
  %1006 = vmatpush1.bf16.msra.mxu0 %v963
  %1007 = vmatprep.subr.bf16.mxu0 0
  %1008 = vmatpush1.bf16.msra.mxu0 0
  %1009 = vmatprep.subr.bf16.mxu0 0
  %1010 = vmatpush1.bf16.msra.mxu0 0
  %1011 = vmatprep.subr.bf16.mxu0 0
  %1012 = vmatpush1.bf16.msra.mxu0 0
  %1013 = vmatprep.subr.bf16.mxu0 0
  %1014 = vmatpush1.bf16.msra.mxu0 0
  %1015 = vmatprep.subr.bf16.mxu0 0
  %1016 = vmatpush1.bf16.msra.mxu0 0
  %1017 = vmatprep.subr.bf16.mxu0 0
  %1018 = vmatpush1.bf16.msra.mxu0 0
  %1019 = vmatprep.subr.bf16.mxu0 0
  %1020 = vmatpush1.bf16.msra.mxu0 0
  %1021 = vmatprep.subr.bf16.mxu0 0
  %1022 = vmatpush1.bf16.msra.mxu0 0
  %1023 = vmatprep.subr.bf16.mxu0 0
  %1024 = vmatpush1.bf16.msra.mxu0 0
  %1025 = vmatprep.subr.bf16.mxu0 0
  %1026 = vmatpush1.bf16.msra.mxu0 0
  %1027 = vmatprep.subr.bf16.mxu0 0
  %1028 = vmatpush1.bf16.msra.mxu0 0
  %1029 = vmatprep.subr.bf16.mxu0 0
  %1030 = vmatpush1.bf16.msra.mxu0 0
  %1031 = vmatprep.subr.bf16.mxu0 0
  %1032 = vmatpush1.bf16.msra.mxu0 0
  %1033 = vmatprep.subr.bf16.mxu0 0
  %1034 = vmatpush1.bf16.msra.mxu0 0
  %1035 = vmatprep.subr.bf16.mxu0 0
  %1036 = vmatpush1.bf16.msra.mxu0 0
  %1037 = vmatprep.mubr.bf16.mxu0 0
  %1038 = vmatmul.mubr.bf16.gmra.mrb[0].mxu0 %v959
  %v1039 = vpop.f32.mrb[0].mxu0
  %v1040 = vadd.f32 %v1000, %v1039
  %v1041 = vpop.f32.mrb[0].mxu0
  %v1042 = vpop.f32.mrb[0].mxu0
  %v1043 = vpop.f32.mrb[0].mxu0
  %1044 = vdwg.mxu0
  %v1078 = vunpack.c.l.b16 %v561
  %v1079 = vunpack.c.l.b16 %v562
  %v1080 = vunpack.c.l.b16 %v563
  %v1081 = vunpack.c.l.b16 %v564
  %v1082 = vunpack.c.l.b16 %v565
  %v1083 = vunpack.c.l.b16 %v566
  %v1084 = vunpack.c.l.b16 %v567
  %v1085 = vunpack.c.l.b16 %v568
  %v1086 = vunpack.c.l.b16 %v569
  %v1087 = vunpack.c.l.b16 %v570
  %v1088 = vunpack.c.l.b16 %v571
  %v1089 = vunpack.c.l.b16 %v572
  %v1090 = vunpack.c.l.b16 %v573
  %v1091 = vunpack.c.l.b16 %v574
  %v1092 = vunpack.c.l.b16 %v575
  %v1093 = vunpack.c.l.b16 %v576
  %v1094 = vunpack.c.l.b16 %v577
  %v1095 = vunpack.c.l.b16 %v578
  %v1096 = vunpack.c.l.b16 %v579
  %v1097 = vunpack.c.l.b16 %v580
  %v1098 = vunpack.c.l.b16 %v581
  %v1099 = vunpack.c.l.b16 %v582
  %v1100 = vunpack.c.l.b16 %v583
  %v1101 = vunpack.c.l.b16 %v584
  %v1102 = vunpack.c.l.b16 %v585
  %v1103 = vunpack.c.l.b16 %v586
  %v1104 = vunpack.c.l.b16 %v587
  %v1105 = vunpack.c.l.b16 %v588
  %v1106 = vunpack.c.l.b16 %v589
  %v1107 = vunpack.c.l.b16 %v590
  %v1108 = vunpack.c.l.b16 %v591
  %v1109 = vunpack.c.l.b16 %v592
  %v1110 = vunpack.c.l.b16 %v593
  %v1111 = vpack.c.b16 %v1079, %v1078
  %v1112 = vpack.c.b16 %v1081, %v1080
  %v1113 = vpack.c.b16 %v1083, %v1082
  %v1114 = vpack.c.b16 %v1085, %v1084
  %v1115 = vpack.c.b16 %v1087, %v1086
  %v1116 = vpack.c.b16 %v1089, %v1088
  %v1117 = vpack.c.b16 %v1091, %v1090
  %v1118 = vpack.c.b16 %v1093, %v1092
  %v1119 = vpack.c.b16 %v1095, %v1094
  %v1120 = vpack.c.b16 %v1097, %v1096
  %v1121 = vpack.c.b16 %v1099, %v1098
  %v1122 = vpack.c.b16 %v1101, %v1100
  %v1123 = vpack.c.b16 %v1103, %v1102
  %v1124 = vpack.c.b16 %v1105, %v1104
  %v1125 = vpack.c.b16 %v1107, %v1106
  %v1126 = vpack.c.b16 %v1109, %v1108
  %v1127 = vpack.c.b16 %v1110, %v1110
  %v1145 = vsel %vm957, %v503, 0
  %v1148 = vsel %vm961, %v1127, 0
  %1150 = vmatprep.subr.bf16.mxu0 0
  %1151 = vmatpush1.bf16.msra.mxu0 %v1111
  %1152 = vmatprep.subr.bf16.mxu0 0
  %1153 = vmatpush1.bf16.msra.mxu0 %v1112
  %1154 = vmatprep.subr.bf16.mxu0 0
  %1155 = vmatpush1.bf16.msra.mxu0 %v1113
  %1156 = vmatprep.subr.bf16.mxu0 0
  %1157 = vmatpush1.bf16.msra.mxu0 %v1114
  %1158 = vmatprep.subr.bf16.mxu0 0
  %1159 = vmatpush1.bf16.msra.mxu0 %v1115
  %1160 = vmatprep.subr.bf16.mxu0 0
  %1161 = vmatpush1.bf16.msra.mxu0 %v1116
  %1162 = vmatprep.subr.bf16.mxu0 0
  %1163 = vmatpush1.bf16.msra.mxu0 %v1117
  %1164 = vmatprep.subr.bf16.mxu0 0
  %1165 = vmatpush1.bf16.msra.mxu0 %v1118
  %1166 = vmatprep.subr.bf16.mxu0 0
  %1167 = vmatpush1.bf16.msra.mxu0 %v1119
  %1168 = vmatprep.subr.bf16.mxu0 0
  %1169 = vmatpush1.bf16.msra.mxu0 %v1120
  %1170 = vmatprep.subr.bf16.mxu0 0
  %1171 = vmatpush1.bf16.msra.mxu0 %v1121
  %1172 = vmatprep.subr.bf16.mxu0 0
  %1173 = vmatpush1.bf16.msra.mxu0 %v1122
  %1174 = vmatprep.subr.bf16.mxu0 0
  %1175 = vmatpush1.bf16.msra.mxu0 %v1123
  %1176 = vmatprep.subr.bf16.mxu0 0
  %1177 = vmatpush1.bf16.msra.mxu0 %v1124
  %1178 = vmatprep.subr.bf16.mxu0 0
  %1179 = vmatpush1.bf16.msra.mxu0 %v1125
  %1180 = vmatprep.subr.bf16.mxu0 0
  %1181 = vmatpush1.bf16.msra.mxu0 %v1126
  %1182 = vmatprep.mubr.bf16.mxu0 %v502
  %1183 = vmatmul.mubr.bf16.gmra.mrb[0].mxu0 %v501
  %v1184 = vpop.f32.mrb[0].mxu0
  %v1185 = vadd.f32 0.0, %v1184
  %v1186 = vpop.f32.mrb[0].mxu0
  %v1187 = vpop.f32.mrb[0].mxu0
  %v1188 = vpop.f32.mrb[0].mxu0
  %1189 = vdwg.mxu0
  %1190 = vmatprep.subr.bf16.mxu0 0
  %1191 = vmatpush1.bf16.msra.mxu0 %v1148
  %1192 = vmatprep.subr.bf16.mxu0 0
  %1193 = vmatpush1.bf16.msra.mxu0 0
  %1194 = vmatprep.subr.bf16.mxu0 0
  %1195 = vmatpush1.bf16.msra.mxu0 0
  %1196 = vmatprep.subr.bf16.mxu0 0
  %1197 = vmatpush1.bf16.msra.mxu0 0
  %1198 = vmatprep.subr.bf16.mxu0 0
  %1199 = vmatpush1.bf16.msra.mxu0 0
  %1200 = vmatprep.subr.bf16.mxu0 0
  %1201 = vmatpush1.bf16.msra.mxu0 0
  %1202 = vmatprep.subr.bf16.mxu0 0
  %1203 = vmatpush1.bf16.msra.mxu0 0
  %1204 = vmatprep.subr.bf16.mxu0 0
  %1205 = vmatpush1.bf16.msra.mxu0 0
  %1206 = vmatprep.subr.bf16.mxu0 0
  %1207 = vmatpush1.bf16.msra.mxu0 0
  %1208 = vmatprep.subr.bf16.mxu0 0
  %1209 = vmatpush1.bf16.msra.mxu0 0
  %1210 = vmatprep.subr.bf16.mxu0 0
  %1211 = vmatpush1.bf16.msra.mxu0 0
  %1212 = vmatprep.subr.bf16.mxu0 0
  %1213 = vmatpush1.bf16.msra.mxu0 0
  %1214 = vmatprep.subr.bf16.mxu0 0
  %1215 = vmatpush1.bf16.msra.mxu0 0
  %1216 = vmatprep.subr.bf16.mxu0 0
  %1217 = vmatpush1.bf16.msra.mxu0 0
  %1218 = vmatprep.subr.bf16.mxu0 0
  %1219 = vmatpush1.bf16.msra.mxu0 0
  %1220 = vmatprep.subr.bf16.mxu0 0
  %1221 = vmatpush1.bf16.msra.mxu0 0
  %1222 = vmatprep.mubr.bf16.mxu0 0
  %1223 = vmatmul.mubr.bf16.gmra.mrb[0].mxu0 %v1145
  %v1224 = vpop.f32.mrb[0].mxu0
  %v1225 = vadd.f32 %v1185, %v1224
  %v1226 = vpop.f32.mrb[0].mxu0
  %v1227 = vpop.f32.mrb[0].mxu0
  %v1228 = vpop.f32.mrb[0].mxu0
  %1229 = vdwg.mxu0
  %v1263 = vunpack.c.l.b16 %v594
  %v1264 = vunpack.c.l.b16 %v595
  %v1265 = vunpack.c.l.b16 %v596
  %v1266 = vunpack.c.l.b16 %v597
  %v1267 = vunpack.c.l.b16 %v598
  %v1268 = vunpack.c.l.b16 %v599
  %v1269 = vunpack.c.l.b16 %v600
  %v1270 = vunpack.c.l.b16 %v601
  %v1271 = vunpack.c.l.b16 %v602
  %v1272 = vunpack.c.l.b16 %v603
  %v1273 = vunpack.c.l.b16 %v604
  %v1274 = vunpack.c.l.b16 %v605
  %v1275 = vunpack.c.l.b16 %v606
  %v1276 = vunpack.c.l.b16 %v607
  %v1277 = vunpack.c.l.b16 %v608
  %v1278 = vunpack.c.l.b16 %v609
  %v1279 = vunpack.c.l.b16 %v610
  %v1280 = vunpack.c.l.b16 %v611
  %v1281 = vunpack.c.l.b16 %v612
  %v1282 = vunpack.c.l.b16 %v613
  %v1283 = vunpack.c.l.b16 %v614
  %v1284 = vunpack.c.l.b16 %v615
  %v1285 = vunpack.c.l.b16 %v616
  %v1286 = vunpack.c.l.b16 %v617
  %v1287 = vunpack.c.l.b16 %v618
  %v1288 = vunpack.c.l.b16 %v619
  %v1289 = vunpack.c.l.b16 %v620
  %v1290 = vunpack.c.l.b16 %v621
  %v1291 = vunpack.c.l.b16 %v622
  %v1292 = vunpack.c.l.b16 %v623
  %v1293 = vunpack.c.l.b16 %v624
  %v1294 = vunpack.c.l.b16 %v625
  %v1295 = vunpack.c.l.b16 %v626
  %v1296 = vpack.c.b16 %v1264, %v1263
  %v1297 = vpack.c.b16 %v1266, %v1265
  %v1298 = vpack.c.b16 %v1268, %v1267
  %v1299 = vpack.c.b16 %v1270, %v1269
  %v1300 = vpack.c.b16 %v1272, %v1271
  %v1301 = vpack.c.b16 %v1274, %v1273
  %v1302 = vpack.c.b16 %v1276, %v1275
  %v1303 = vpack.c.b16 %v1278, %v1277
  %v1304 = vpack.c.b16 %v1280, %v1279
  %v1305 = vpack.c.b16 %v1282, %v1281
  %v1306 = vpack.c.b16 %v1284, %v1283
  %v1307 = vpack.c.b16 %v1286, %v1285
  %v1308 = vpack.c.b16 %v1288, %v1287
  %v1309 = vpack.c.b16 %v1290, %v1289
  %v1310 = vpack.c.b16 %v1292, %v1291
  %v1311 = vpack.c.b16 %v1294, %v1293
  %v1312 = vpack.c.b16 %v1295, %v1295
  %v1330 = vsel %vm957, %v506, 0
  %v1333 = vsel %vm961, %v1312, 0
  %1335 = vmatprep.subr.bf16.mxu0 0
  %1336 = vmatpush1.bf16.msra.mxu0 %v1296
  %1337 = vmatprep.subr.bf16.mxu0 0
  %1338 = vmatpush1.bf16.msra.mxu0 %v1297
  %1339 = vmatprep.subr.bf16.mxu0 0
  %1340 = vmatpush1.bf16.msra.mxu0 %v1298
  %1341 = vmatprep.subr.bf16.mxu0 0
  %1342 = vmatpush1.bf16.msra.mxu0 %v1299
  %1343 = vmatprep.subr.bf16.mxu0 0
  %1344 = vmatpush1.bf16.msra.mxu0 %v1300
  %1345 = vmatprep.subr.bf16.mxu0 0
  %1346 = vmatpush1.bf16.msra.mxu0 %v1301
  %1347 = vmatprep.subr.bf16.mxu0 0
  %1348 = vmatpush1.bf16.msra.mxu0 %v1302
  %1349 = vmatprep.subr.bf16.mxu0 0
  %1350 = vmatpush1.bf16.msra.mxu0 %v1303
  %1351 = vmatprep.subr.bf16.mxu0 0
  %1352 = vmatpush1.bf16.msra.mxu0 %v1304
  %1353 = vmatprep.subr.bf16.mxu0 0
  %1354 = vmatpush1.bf16.msra.mxu0 %v1305
  %1355 = vmatprep.subr.bf16.mxu0 0
  %1356 = vmatpush1.bf16.msra.mxu0 %v1306
  %1357 = vmatprep.subr.bf16.mxu0 0
  %1358 = vmatpush1.bf16.msra.mxu0 %v1307
  %1359 = vmatprep.subr.bf16.mxu0 0
  %1360 = vmatpush1.bf16.msra.mxu0 %v1308
  %1361 = vmatprep.subr.bf16.mxu0 0
  %1362 = vmatpush1.bf16.msra.mxu0 %v1309
  %1363 = vmatprep.subr.bf16.mxu0 0
  %1364 = vmatpush1.bf16.msra.mxu0 %v1310
  %1365 = vmatprep.subr.bf16.mxu0 0
  %1366 = vmatpush1.bf16.msra.mxu0 %v1311
  %1367 = vmatprep.mubr.bf16.mxu0 %v505
  %1368 = vmatmul.mubr.bf16.gmra.mrb[0].mxu0 %v504
  %v1369 = vpop.f32.mrb[0].mxu0
  %v1370 = vadd.f32 0.0, %v1369
  %v1371 = vpop.f32.mrb[0].mxu0
  %v1372 = vpop.f32.mrb[0].mxu0
  %v1373 = vpop.f32.mrb[0].mxu0
  %1374 = vdwg.mxu0
  %1375 = vmatprep.subr.bf16.mxu0 0
  %1376 = vmatpush1.bf16.msra.mxu0 %v1333
  %1377 = vmatprep.subr.bf16.mxu0 0
  %1378 = vmatpush1.bf16.msra.mxu0 0
  %1379 = vmatprep.subr.bf16.mxu0 0
  %1380 = vmatpush1.bf16.msra.mxu0 0
  %1381 = vmatprep.subr.bf16.mxu0 0
  %1382 = vmatpush1.bf16.msra.mxu0 0
  %1383 = vmatprep.subr.bf16.mxu0 0
  %1384 = vmatpush1.bf16.msra.mxu0 0
  %1385 = vmatprep.subr.bf16.mxu0 0
  %1386 = vmatpush1.bf16.msra.mxu0 0
  %1387 = vmatprep.subr.bf16.mxu0 0
  %1388 = vmatpush1.bf16.msra.mxu0 0
  %1389 = vmatprep.subr.bf16.mxu0 0
  %1390 = vmatpush1.bf16.msra.mxu0 0
  %1391 = vmatprep.subr.bf16.mxu0 0
  %1392 = vmatpush1.bf16.msra.mxu0 0
  %1393 = vmatprep.subr.bf16.mxu0 0
  %1394 = vmatpush1.bf16.msra.mxu0 0
  %1395 = vmatprep.subr.bf16.mxu0 0
  %1396 = vmatpush1.bf16.msra.mxu0 0
  %1397 = vmatprep.subr.bf16.mxu0 0
  %1398 = vmatpush1.bf16.msra.mxu0 0
  %1399 = vmatprep.subr.bf16.mxu0 0
  %1400 = vmatpush1.bf16.msra.mxu0 0
  %1401 = vmatprep.subr.bf16.mxu0 0
  %1402 = vmatpush1.bf16.msra.mxu0 0
  %1403 = vmatprep.subr.bf16.mxu0 0
  %1404 = vmatpush1.bf16.msra.mxu0 0
  %1405 = vmatprep.subr.bf16.mxu0 0
  %1406 = vmatpush1.bf16.msra.mxu0 0
  %1407 = vmatprep.mubr.bf16.mxu0 0
  %1408 = vmatmul.mubr.bf16.gmra.mrb[0].mxu0 %v1330
  %v1409 = vpop.f32.mrb[0].mxu0
  %v1410 = vadd.f32 %v1370, %v1409
  %v1411 = vpop.f32.mrb[0].mxu0
  %v1412 = vpop.f32.mrb[0].mxu0
  %v1413 = vpop.f32.mrb[0].mxu0
  %1414 = vdwg.mxu0
  %v1448 = vunpack.c.l.b16 %v627
  %v1449 = vunpack.c.l.b16 %v628
  %v1450 = vunpack.c.l.b16 %v629
  %v1451 = vunpack.c.l.b16 %v630
  %v1452 = vunpack.c.l.b16 %v631
  %v1453 = vunpack.c.l.b16 %v632
  %v1454 = vunpack.c.l.b16 %v633
  %v1455 = vunpack.c.l.b16 %v634
  %v1456 = vunpack.c.l.b16 %v635
  %v1457 = vunpack.c.l.b16 %v636
  %v1458 = vunpack.c.l.b16 %v637
  %v1459 = vunpack.c.l.b16 %v638
  %v1460 = vunpack.c.l.b16 %v639
  %v1461 = vunpack.c.l.b16 %v640
  %v1462 = vunpack.c.l.b16 %v641
  %v1463 = vunpack.c.l.b16 %v642
  %v1464 = vunpack.c.l.b16 %v643
  %v1465 = vunpack.c.l.b16 %v644
  %v1466 = vunpack.c.l.b16 %v645
  %v1467 = vunpack.c.l.b16 %v646
  %v1468 = vunpack.c.l.b16 %v647
  %v1469 = vunpack.c.l.b16 %v648
  %v1470 = vunpack.c.l.b16 %v649
  %v1471 = vunpack.c.l.b16 %v650
  %v1472 = vunpack.c.l.b16 %v651
  %v1473 = vunpack.c.l.b16 %v652
  %v1474 = vunpack.c.l.b16 %v653
  %v1475 = vunpack.c.l.b16 %v654
  %v1476 = vunpack.c.l.b16 %v655
  %v1477 = vunpack.c.l.b16 %v656
  %v1478 = vunpack.c.l.b16 %v657
  %v1479 = vunpack.c.l.b16 %v658
  %v1480 = vunpack.c.l.b16 %v659
  %v1481 = vpack.c.b16 %v1449, %v1448
  %v1482 = vpack.c.b16 %v1451, %v1450
  %v1483 = vpack.c.b16 %v1453, %v1452
  %v1484 = vpack.c.b16 %v1455, %v1454
  %v1485 = vpack.c.b16 %v1457, %v1456
  %v1486 = vpack.c.b16 %v1459, %v1458
  %v1487 = vpack.c.b16 %v1461, %v1460
  %v1488 = vpack.c.b16 %v1463, %v1462
  %v1489 = vpack.c.b16 %v1465, %v1464
  %v1490 = vpack.c.b16 %v1467, %v1466
  %v1491 = vpack.c.b16 %v1469, %v1468
  %v1492 = vpack.c.b16 %v1471, %v1470
  %v1493 = vpack.c.b16 %v1473, %v1472
  %v1494 = vpack.c.b16 %v1475, %v1474
  %v1495 = vpack.c.b16 %v1477, %v1476
  %v1496 = vpack.c.b16 %v1479, %v1478
  %v1497 = vpack.c.b16 %v1480, %v1480
  %v1515 = vsel %vm957, %v509, 0
  %v1518 = vsel %vm961, %v1497, 0
  %1520 = vmatprep.subr.bf16.mxu0 0
  %1521 = vmatpush1.bf16.msra.mxu0 %v1481
  %1522 = vmatprep.subr.bf16.mxu0 0
  %1523 = vmatpush1.bf16.msra.mxu0 %v1482
  %1524 = vmatprep.subr.bf16.mxu0 0
  %1525 = vmatpush1.bf16.msra.mxu0 %v1483
  %1526 = vmatprep.subr.bf16.mxu0 0
  %1527 = vmatpush1.bf16.msra.mxu0 %v1484
  %1528 = vmatprep.subr.bf16.mxu0 0
  %1529 = vmatpush1.bf16.msra.mxu0 %v1485
  %1530 = vmatprep.subr.bf16.mxu0 0
  %1531 = vmatpush1.bf16.msra.mxu0 %v1486
  %1532 = vmatprep.subr.bf16.mxu0 0
  %1533 = vmatpush1.bf16.msra.mxu0 %v1487
  %1534 = vmatprep.subr.bf16.mxu0 0
  %1535 = vmatpush1.bf16.msra.mxu0 %v1488
  %1536 = vmatprep.subr.bf16.mxu0 0
  %1537 = vmatpush1.bf16.msra.mxu0 %v1489
  %1538 = vmatprep.subr.bf16.mxu0 0
  %1539 = vmatpush1.bf16.msra.mxu0 %v1490
  %1540 = vmatprep.subr.bf16.mxu0 0
  %1541 = vmatpush1.bf16.msra.mxu0 %v1491
  %1542 = vmatprep.subr.bf16.mxu0 0
  %1543 = vmatpush1.bf16.msra.mxu0 %v1492
  %1544 = vmatprep.subr.bf16.mxu0 0
  %1545 = vmatpush1.bf16.msra.mxu0 %v1493
  %1546 = vmatprep.subr.bf16.mxu0 0
  %1547 = vmatpush1.bf16.msra.mxu0 %v1494
  %1548 = vmatprep.subr.bf16.mxu0 0
  %1549 = vmatpush1.bf16.msra.mxu0 %v1495
  %1550 = vmatprep.subr.bf16.mxu0 0
  %1551 = vmatpush1.bf16.msra.mxu0 %v1496
  %1552 = vmatprep.mubr.bf16.mxu0 %v508
  %1553 = vmatmul.mubr.bf16.gmra.mrb[0].mxu0 %v507
  %v1554 = vpop.f32.mrb[0].mxu0
  %v1555 = vadd.f32 0.0, %v1554
  %v1556 = vpop.f32.mrb[0].mxu0
  %v1557 = vpop.f32.mrb[0].mxu0
  %v1558 = vpop.f32.mrb[0].mxu0
  %1559 = vdwg.mxu0
  %1560 = vmatprep.subr.bf16.mxu0 0
  %1561 = vmatpush1.bf16.msra.mxu0 %v1518
  %1562 = vmatprep.subr.bf16.mxu0 0
  %1563 = vmatpush1.bf16.msra.mxu0 0
  %1564 = vmatprep.subr.bf16.mxu0 0
  %1565 = vmatpush1.bf16.msra.mxu0 0
  %1566 = vmatprep.subr.bf16.mxu0 0
  %1567 = vmatpush1.bf16.msra.mxu0 0
  %1568 = vmatprep.subr.bf16.mxu0 0
  %1569 = vmatpush1.bf16.msra.mxu0 0
  %1570 = vmatprep.subr.bf16.mxu0 0
  %1571 = vmatpush1.bf16.msra.mxu0 0
  %1572 = vmatprep.subr.bf16.mxu0 0
  %1573 = vmatpush1.bf16.msra.mxu0 0
  %1574 = vmatprep.subr.bf16.mxu0 0
  %1575 = vmatpush1.bf16.msra.mxu0 0
  %1576 = vmatprep.subr.bf16.mxu0 0
  %1577 = vmatpush1.bf16.msra.mxu0 0
  %1578 = vmatprep.subr.bf16.mxu0 0
  %1579 = vmatpush1.bf16.msra.mxu0 0
  %1580 = vmatprep.subr.bf16.mxu0 0
  %1581 = vmatpush1.bf16.msra.mxu0 0
  %1582 = vmatprep.subr.bf16.mxu0 0
  %1583 = vmatpush1.bf16.msra.mxu0 0
  %1584 = vmatprep.subr.bf16.mxu0 0
  %1585 = vmatpush1.bf16.msra.mxu0 0
  %1586 = vmatprep.subr.bf16.mxu0 0
  %1587 = vmatpush1.bf16.msra.mxu0 0
  %1588 = vmatprep.subr.bf16.mxu0 0
  %1589 = vmatpush1.bf16.msra.mxu0 0
  %1590 = vmatprep.subr.bf16.mxu0 0
  %1591 = vmatpush1.bf16.msra.mxu0 0
  %1592 = vmatprep.mubr.bf16.mxu0 0
  %1593 = vmatmul.mubr.bf16.gmra.mrb[0].mxu0 %v1515
  %v1594 = vpop.f32.mrb[0].mxu0
  %v1595 = vadd.f32 %v1555, %v1594
  %v1596 = vpop.f32.mrb[0].mxu0
  %v1597 = vpop.f32.mrb[0].mxu0
  %v1598 = vpop.f32.mrb[0].mxu0
  %1599 = vdwg.mxu0
  %v1633 = vunpack.c.l.b16 %v660
  %v1634 = vunpack.c.l.b16 %v661
  %v1635 = vunpack.c.l.b16 %v662
  %v1636 = vunpack.c.l.b16 %v663
  %v1637 = vunpack.c.l.b16 %v664
  %v1638 = vunpack.c.l.b16 %v665
  %v1639 = vunpack.c.l.b16 %v666
  %v1640 = vunpack.c.l.b16 %v667
  %v1641 = vunpack.c.l.b16 %v668
  %v1642 = vunpack.c.l.b16 %v669
  %v1643 = vunpack.c.l.b16 %v670
  %v1644 = vunpack.c.l.b16 %v671
  %v1645 = vunpack.c.l.b16 %v672
  %v1646 = vunpack.c.l.b16 %v673
  %v1647 = vunpack.c.l.b16 %v674
  %v1648 = vunpack.c.l.b16 %v675
  %v1649 = vunpack.c.l.b16 %v676
  %v1650 = vunpack.c.l.b16 %v677
  %v1651 = vunpack.c.l.b16 %v678
  %v1652 = vunpack.c.l.b16 %v679
  %v1653 = vunpack.c.l.b16 %v680
  %v1654 = vunpack.c.l.b16 %v681
  %v1655 = vunpack.c.l.b16 %v682
  %v1656 = vunpack.c.l.b16 %v683
  %v1657 = vunpack.c.l.b16 %v684
  %v1658 = vunpack.c.l.b16 %v685
  %v1659 = vunpack.c.l.b16 %v686
  %v1660 = vunpack.c.l.b16 %v687
  %v1661 = vunpack.c.l.b16 %v688
  %v1662 = vunpack.c.l.b16 %v689
  %v1663 = vunpack.c.l.b16 %v690
  %v1664 = vunpack.c.l.b16 %v691
  %v1665 = vunpack.c.l.b16 %v692
  %v1666 = vpack.c.b16 %v1634, %v1633
  %v1667 = vpack.c.b16 %v1636, %v1635
  %v1668 = vpack.c.b16 %v1638, %v1637
  %v1669 = vpack.c.b16 %v1640, %v1639
  %v1670 = vpack.c.b16 %v1642, %v1641
  %v1671 = vpack.c.b16 %v1644, %v1643
  %v1672 = vpack.c.b16 %v1646, %v1645
  %v1673 = vpack.c.b16 %v1648, %v1647
  %v1674 = vpack.c.b16 %v1650, %v1649
  %v1675 = vpack.c.b16 %v1652, %v1651
  %v1676 = vpack.c.b16 %v1654, %v1653
  %v1677 = vpack.c.b16 %v1656, %v1655
  %v1678 = vpack.c.b16 %v1658, %v1657
  %v1679 = vpack.c.b16 %v1660, %v1659
  %v1680 = vpack.c.b16 %v1662, %v1661
  %v1681 = vpack.c.b16 %v1664, %v1663
  %v1682 = vpack.c.b16 %v1665, %v1665
  %v1700 = vsel %vm957, %v512, 0
  %v1703 = vsel %vm961, %v1682, 0
  %1705 = vmatprep.subr.bf16.mxu0 0
  %1706 = vmatpush1.bf16.msra.mxu0 %v1666
  %1707 = vmatprep.subr.bf16.mxu0 0
  %1708 = vmatpush1.bf16.msra.mxu0 %v1667
  %1709 = vmatprep.subr.bf16.mxu0 0
  %1710 = vmatpush1.bf16.msra.mxu0 %v1668
  %1711 = vmatprep.subr.bf16.mxu0 0
  %1712 = vmatpush1.bf16.msra.mxu0 %v1669
  %1713 = vmatprep.subr.bf16.mxu0 0
  %1714 = vmatpush1.bf16.msra.mxu0 %v1670
  %1715 = vmatprep.subr.bf16.mxu0 0
  %1716 = vmatpush1.bf16.msra.mxu0 %v1671
  %1717 = vmatprep.subr.bf16.mxu0 0
  %1718 = vmatpush1.bf16.msra.mxu0 %v1672
  %1719 = vmatprep.subr.bf16.mxu0 0
  %1720 = vmatpush1.bf16.msra.mxu0 %v1673
  %1721 = vmatprep.subr.bf16.mxu0 0
  %1722 = vmatpush1.bf16.msra.mxu0 %v1674
  %1723 = vmatprep.subr.bf16.mxu0 0
  %1724 = vmatpush1.bf16.msra.mxu0 %v1675
  %1725 = vmatprep.subr.bf16.mxu0 0
  %1726 = vmatpush1.bf16.msra.mxu0 %v1676
  %1727 = vmatprep.subr.bf16.mxu0 0
  %1728 = vmatpush1.bf16.msra.mxu0 %v1677
  %1729 = vmatprep.subr.bf16.mxu0 0
  %1730 = vmatpush1.bf16.msra.mxu0 %v1678
  %1731 = vmatprep.subr.bf16.mxu0 0
  %1732 = vmatpush1.bf16.msra.mxu0 %v1679
  %1733 = vmatprep.subr.bf16.mxu0 0
  %1734 = vmatpush1.bf16.msra.mxu0 %v1680
  %1735 = vmatprep.subr.bf16.mxu0 0
  %1736 = vmatpush1.bf16.msra.mxu0 %v1681
  %1737 = vmatprep.mubr.bf16.mxu0 %v511
  %1738 = vmatmul.mubr.bf16.gmra.mrb[0].mxu0 %v510
  %v1739 = vpop.f32.mrb[0].mxu0
  %v1740 = vadd.f32 0.0, %v1739
  %v1741 = vpop.f32.mrb[0].mxu0
  %v1742 = vpop.f32.mrb[0].mxu0
  %v1743 = vpop.f32.mrb[0].mxu0
  %1744 = vdwg.mxu0
  %1745 = vmatprep.subr.bf16.mxu0 0
  %1746 = vmatpush1.bf16.msra.mxu0 %v1703
  %1747 = vmatprep.subr.bf16.mxu0 0
  %1748 = vmatpush1.bf16.msra.mxu0 0
  %1749 = vmatprep.subr.bf16.mxu0 0
  %1750 = vmatpush1.bf16.msra.mxu0 0
  %1751 = vmatprep.subr.bf16.mxu0 0
  %1752 = vmatpush1.bf16.msra.mxu0 0
  %1753 = vmatprep.subr.bf16.mxu0 0
  %1754 = vmatpush1.bf16.msra.mxu0 0
  %1755 = vmatprep.subr.bf16.mxu0 0
  %1756 = vmatpush1.bf16.msra.mxu0 0
  %1757 = vmatprep.subr.bf16.mxu0 0
  %1758 = vmatpush1.bf16.msra.mxu0 0
  %1759 = vmatprep.subr.bf16.mxu0 0
  %1760 = vmatpush1.bf16.msra.mxu0 0
  %1761 = vmatprep.subr.bf16.mxu0 0
  %1762 = vmatpush1.bf16.msra.mxu0 0
  %1763 = vmatprep.subr.bf16.mxu0 0
  %1764 = vmatpush1.bf16.msra.mxu0 0
  %1765 = vmatprep.subr.bf16.mxu0 0
  %1766 = vmatpush1.bf16.msra.mxu0 0
  %1767 = vmatprep.subr.bf16.mxu0 0
  %1768 = vmatpush1.bf16.msra.mxu0 0
  %1769 = vmatprep.subr.bf16.mxu0 0
  %1770 = vmatpush1.bf16.msra.mxu0 0
  %1771 = vmatprep.subr.bf16.mxu0 0
  %1772 = vmatpush1.bf16.msra.mxu0 0
  %1773 = vmatprep.subr.bf16.mxu0 0
  %1774 = vmatpush1.bf16.msra.mxu0 0
  %1775 = vmatprep.subr.bf16.mxu0 0
  %1776 = vmatpush1.bf16.msra.mxu0 0
  %1777 = vmatprep.mubr.bf16.mxu0 0
  %1778 = vmatmul.mubr.bf16.gmra.mrb[0].mxu0 %v1700
  %v1779 = vpop.f32.mrb[0].mxu0
  %v1780 = vadd.f32 %v1740, %v1779
  %v1781 = vpop.f32.mrb[0].mxu0
  %v1782 = vpop.f32.mrb[0].mxu0
  %v1783 = vpop.f32.mrb[0].mxu0
  %1784 = vdwg.mxu0
  %v1818 = vunpack.c.l.b16 %v693
  %v1819 = vunpack.c.l.b16 %v694
  %v1820 = vunpack.c.l.b16 %v695
  %v1821 = vunpack.c.l.b16 %v696
  %v1822 = vunpack.c.l.b16 %v697
  %v1823 = vunpack.c.l.b16 %v698
  %v1824 = vunpack.c.l.b16 %v699
  %v1825 = vunpack.c.l.b16 %v700
  %v1826 = vunpack.c.l.b16 %v701
  %v1827 = vunpack.c.l.b16 %v702
  %v1828 = vunpack.c.l.b16 %v703
  %v1829 = vunpack.c.l.b16 %v704
  %v1830 = vunpack.c.l.b16 %v705
  %v1831 = vunpack.c.l.b16 %v706
  %v1832 = vunpack.c.l.b16 %v707
  %v1833 = vunpack.c.l.b16 %v708
  %v1834 = vunpack.c.l.b16 %v709
  %v1835 = vunpack.c.l.b16 %v710
  %v1836 = vunpack.c.l.b16 %v711
  %v1837 = vunpack.c.l.b16 %v712
  %v1838 = vunpack.c.l.b16 %v713
  %v1839 = vunpack.c.l.b16 %v714
  %v1840 = vunpack.c.l.b16 %v715
  %v1841 = vunpack.c.l.b16 %v716
  %v1842 = vunpack.c.l.b16 %v717
  %v1843 = vunpack.c.l.b16 %v718
  %v1844 = vunpack.c.l.b16 %v719
  %v1845 = vunpack.c.l.b16 %v720
  %v1846 = vunpack.c.l.b16 %v721
  %v1847 = vunpack.c.l.b16 %v722
  %v1848 = vunpack.c.l.b16 %v723
  %v1849 = vunpack.c.l.b16 %v724
  %v1850 = vunpack.c.l.b16 %v725
  %v1851 = vpack.c.b16 %v1819, %v1818
  %v1852 = vpack.c.b16 %v1821, %v1820
  %v1853 = vpack.c.b16 %v1823, %v1822
  %v1854 = vpack.c.b16 %v1825, %v1824
  %v1855 = vpack.c.b16 %v1827, %v1826
  %v1856 = vpack.c.b16 %v1829, %v1828
  %v1857 = vpack.c.b16 %v1831, %v1830
  %v1858 = vpack.c.b16 %v1833, %v1832
  %v1859 = vpack.c.b16 %v1835, %v1834
  %v1860 = vpack.c.b16 %v1837, %v1836
  %v1861 = vpack.c.b16 %v1839, %v1838
  %v1862 = vpack.c.b16 %v1841, %v1840
  %v1863 = vpack.c.b16 %v1843, %v1842
  %v1864 = vpack.c.b16 %v1845, %v1844
  %v1865 = vpack.c.b16 %v1847, %v1846
  %v1866 = vpack.c.b16 %v1849, %v1848
  %v1867 = vpack.c.b16 %v1850, %v1850
  %v1885 = vsel %vm957, %v515, 0
  %v1888 = vsel %vm961, %v1867, 0
  %1890 = vmatprep.subr.bf16.mxu0 0
  %1891 = vmatpush1.bf16.msra.mxu0 %v1851
  %1892 = vmatprep.subr.bf16.mxu0 0
  %1893 = vmatpush1.bf16.msra.mxu0 %v1852
  %1894 = vmatprep.subr.bf16.mxu0 0
  %1895 = vmatpush1.bf16.msra.mxu0 %v1853
  %1896 = vmatprep.subr.bf16.mxu0 0
  %1897 = vmatpush1.bf16.msra.mxu0 %v1854
  %1898 = vmatprep.subr.bf16.mxu0 0
  %1899 = vmatpush1.bf16.msra.mxu0 %v1855
  %1900 = vmatprep.subr.bf16.mxu0 0
  %1901 = vmatpush1.bf16.msra.mxu0 %v1856
  %1902 = vmatprep.subr.bf16.mxu0 0
  %1903 = vmatpush1.bf16.msra.mxu0 %v1857
  %1904 = vmatprep.subr.bf16.mxu0 0
  %1905 = vmatpush1.bf16.msra.mxu0 %v1858
  %1906 = vmatprep.subr.bf16.mxu0 0
  %1907 = vmatpush1.bf16.msra.mxu0 %v1859
  %1908 = vmatprep.subr.bf16.mxu0 0
  %1909 = vmatpush1.bf16.msra.mxu0 %v1860
  %1910 = vmatprep.subr.bf16.mxu0 0
  %1911 = vmatpush1.bf16.msra.mxu0 %v1861
  %1912 = vmatprep.subr.bf16.mxu0 0
  %1913 = vmatpush1.bf16.msra.mxu0 %v1862
  %1914 = vmatprep.subr.bf16.mxu0 0
  %1915 = vmatpush1.bf16.msra.mxu0 %v1863
  %1916 = vmatprep.subr.bf16.mxu0 0
  %1917 = vmatpush1.bf16.msra.mxu0 %v1864
  %1918 = vmatprep.subr.bf16.mxu0 0
  %1919 = vmatpush1.bf16.msra.mxu0 %v1865
  %1920 = vmatprep.subr.bf16.mxu0 0
  %1921 = vmatpush1.bf16.msra.mxu0 %v1866
  %1922 = vmatprep.mubr.bf16.mxu0 %v514
  %1923 = vmatmul.mubr.bf16.gmra.mrb[0].mxu0 %v513
  %v1924 = vpop.f32.mrb[0].mxu0
  %v1925 = vadd.f32 0.0, %v1924
  %v1926 = vpop.f32.mrb[0].mxu0
  %v1927 = vpop.f32.mrb[0].mxu0
  %v1928 = vpop.f32.mrb[0].mxu0
  %1929 = vdwg.mxu0
  %1930 = vmatprep.subr.bf16.mxu0 0
  %1931 = vmatpush1.bf16.msra.mxu0 %v1888
  %1932 = vmatprep.subr.bf16.mxu0 0
  %1933 = vmatpush1.bf16.msra.mxu0 0
  %1934 = vmatprep.subr.bf16.mxu0 0
  %1935 = vmatpush1.bf16.msra.mxu0 0
  %1936 = vmatprep.subr.bf16.mxu0 0
  %1937 = vmatpush1.bf16.msra.mxu0 0
  %1938 = vmatprep.subr.bf16.mxu0 0
  %1939 = vmatpush1.bf16.msra.mxu0 0
  %1940 = vmatprep.subr.bf16.mxu0 0
  %1941 = vmatpush1.bf16.msra.mxu0 0
  %1942 = vmatprep.subr.bf16.mxu0 0
  %1943 = vmatpush1.bf16.msra.mxu0 0
  %1944 = vmatprep.subr.bf16.mxu0 0
  %1945 = vmatpush1.bf16.msra.mxu0 0
  %1946 = vmatprep.subr.bf16.mxu0 0
  %1947 = vmatpush1.bf16.msra.mxu0 0
  %1948 = vmatprep.subr.bf16.mxu0 0
  %1949 = vmatpush1.bf16.msra.mxu0 0
  %1950 = vmatprep.subr.bf16.mxu0 0
  %1951 = vmatpush1.bf16.msra.mxu0 0
  %1952 = vmatprep.subr.bf16.mxu0 0
  %1953 = vmatpush1.bf16.msra.mxu0 0
  %1954 = vmatprep.subr.bf16.mxu0 0
  %1955 = vmatpush1.bf16.msra.mxu0 0
  %1956 = vmatprep.subr.bf16.mxu0 0
  %1957 = vmatpush1.bf16.msra.mxu0 0
  %1958 = vmatprep.subr.bf16.mxu0 0
  %1959 = vmatpush1.bf16.msra.mxu0 0
  %1960 = vmatprep.subr.bf16.mxu0 0
  %1961 = vmatpush1.bf16.msra.mxu0 0
  %1962 = vmatprep.mubr.bf16.mxu0 0
  %1963 = vmatmul.mubr.bf16.gmra.mrb[0].mxu0 %v1885
  %v1964 = vpop.f32.mrb[0].mxu0
  %v1965 = vadd.f32 %v1925, %v1964
  %v1966 = vpop.f32.mrb[0].mxu0
  %v1967 = vpop.f32.mrb[0].mxu0
  %v1968 = vpop.f32.mrb[0].mxu0
  %1969 = vdwg.mxu0
  %v2003 = vunpack.c.l.b16 %v726
  %v2004 = vunpack.c.l.b16 %v727
  %v2005 = vunpack.c.l.b16 %v728
  %v2006 = vunpack.c.l.b16 %v729
  %v2007 = vunpack.c.l.b16 %v730
  %v2008 = vunpack.c.l.b16 %v731
  %v2009 = vunpack.c.l.b16 %v732
  %v2010 = vunpack.c.l.b16 %v733
  %v2011 = vunpack.c.l.b16 %v734
  %v2012 = vunpack.c.l.b16 %v735
  %v2013 = vunpack.c.l.b16 %v736
  %v2014 = vunpack.c.l.b16 %v737
  %v2015 = vunpack.c.l.b16 %v738
  %v2016 = vunpack.c.l.b16 %v739
  %v2017 = vunpack.c.l.b16 %v740
  %v2018 = vunpack.c.l.b16 %v741
  %v2019 = vunpack.c.l.b16 %v742
  %v2020 = vunpack.c.l.b16 %v743
  %v2021 = vunpack.c.l.b16 %v744
  %v2022 = vunpack.c.l.b16 %v745
  %v2023 = vunpack.c.l.b16 %v746
  %v2024 = vunpack.c.l.b16 %v747
  %v2025 = vunpack.c.l.b16 %v748
  %v2026 = vunpack.c.l.b16 %v749
  %v2027 = vunpack.c.l.b16 %v750
  %v2028 = vunpack.c.l.b16 %v751
  %v2029 = vunpack.c.l.b16 %v752
  %v2030 = vunpack.c.l.b16 %v753
  %v2031 = vunpack.c.l.b16 %v754
  %v2032 = vunpack.c.l.b16 %v755
  %v2033 = vunpack.c.l.b16 %v756
  %v2034 = vunpack.c.l.b16 %v757
  %v2035 = vunpack.c.l.b16 %v758
  %v2036 = vpack.c.b16 %v2004, %v2003
  %v2037 = vpack.c.b16 %v2006, %v2005
  %v2038 = vpack.c.b16 %v2008, %v2007
  %v2039 = vpack.c.b16 %v2010, %v2009
  %v2040 = vpack.c.b16 %v2012, %v2011
  %v2041 = vpack.c.b16 %v2014, %v2013
  %v2042 = vpack.c.b16 %v2016, %v2015
  %v2043 = vpack.c.b16 %v2018, %v2017
  %v2044 = vpack.c.b16 %v2020, %v2019
  %v2045 = vpack.c.b16 %v2022, %v2021
  %v2046 = vpack.c.b16 %v2024, %v2023
  %v2047 = vpack.c.b16 %v2026, %v2025
  %v2048 = vpack.c.b16 %v2028, %v2027
  %v2049 = vpack.c.b16 %v2030, %v2029
  %v2050 = vpack.c.b16 %v2032, %v2031
  %v2051 = vpack.c.b16 %v2034, %v2033
  %v2052 = vpack.c.b16 %v2035, %v2035
  %v2070 = vsel %vm957, %v518, 0
  %v2073 = vsel %vm961, %v2052, 0
  %2075 = vmatprep.subr.bf16.mxu0 0
  %2076 = vmatpush1.bf16.msra.mxu0 %v2036
  %2077 = vmatprep.subr.bf16.mxu0 0
  %2078 = vmatpush1.bf16.msra.mxu0 %v2037
  %2079 = vmatprep.subr.bf16.mxu0 0
  %2080 = vmatpush1.bf16.msra.mxu0 %v2038
  %2081 = vmatprep.subr.bf16.mxu0 0
  %2082 = vmatpush1.bf16.msra.mxu0 %v2039
  %2083 = vmatprep.subr.bf16.mxu0 0
  %2084 = vmatpush1.bf16.msra.mxu0 %v2040
  %2085 = vmatprep.subr.bf16.mxu0 0
  %2086 = vmatpush1.bf16.msra.mxu0 %v2041
  %2087 = vmatprep.subr.bf16.mxu0 0
  %2088 = vmatpush1.bf16.msra.mxu0 %v2042
  %2089 = vmatprep.subr.bf16.mxu0 0
  %2090 = vmatpush1.bf16.msra.mxu0 %v2043
  %2091 = vmatprep.subr.bf16.mxu0 0
  %2092 = vmatpush1.bf16.msra.mxu0 %v2044
  %2093 = vmatprep.subr.bf16.mxu0 0
  %2094 = vmatpush1.bf16.msra.mxu0 %v2045
  %2095 = vmatprep.subr.bf16.mxu0 0
  %2096 = vmatpush1.bf16.msra.mxu0 %v2046
  %2097 = vmatprep.subr.bf16.mxu0 0
  %2098 = vmatpush1.bf16.msra.mxu0 %v2047
  %2099 = vmatprep.subr.bf16.mxu0 0
  %2100 = vmatpush1.bf16.msra.mxu0 %v2048
  %2101 = vmatprep.subr.bf16.mxu0 0
  %2102 = vmatpush1.bf16.msra.mxu0 %v2049
  %2103 = vmatprep.subr.bf16.mxu0 0
  %2104 = vmatpush1.bf16.msra.mxu0 %v2050
  %2105 = vmatprep.subr.bf16.mxu0 0
  %2106 = vmatpush1.bf16.msra.mxu0 %v2051
  %2107 = vmatprep.mubr.bf16.mxu0 %v517
  %2108 = vmatmul.mubr.bf16.gmra.mrb[0].mxu0 %v516
  %v2109 = vpop.f32.mrb[0].mxu0
  %v2110 = vadd.f32 0.0, %v2109
  %v2111 = vpop.f32.mrb[0].mxu0
  %v2112 = vpop.f32.mrb[0].mxu0
  %v2113 = vpop.f32.mrb[0].mxu0
  %2114 = vdwg.mxu0
  %2115 = vmatprep.subr.bf16.mxu0 0
  %2116 = vmatpush1.bf16.msra.mxu0 %v2073
  %2117 = vmatprep.subr.bf16.mxu0 0
  %2118 = vmatpush1.bf16.msra.mxu0 0
  %2119 = vmatprep.subr.bf16.mxu0 0
  %2120 = vmatpush1.bf16.msra.mxu0 0
  %2121 = vmatprep.subr.bf16.mxu0 0
  %2122 = vmatpush1.bf16.msra.mxu0 0
  %2123 = vmatprep.subr.bf16.mxu0 0
  %2124 = vmatpush1.bf16.msra.mxu0 0
  %2125 = vmatprep.subr.bf16.mxu0 0
  %2126 = vmatpush1.bf16.msra.mxu0 0
  %2127 = vmatprep.subr.bf16.mxu0 0
  %2128 = vmatpush1.bf16.msra.mxu0 0
  %2129 = vmatprep.subr.bf16.mxu0 0
  %2130 = vmatpush1.bf16.msra.mxu0 0
  %2131 = vmatprep.subr.bf16.mxu0 0
  %2132 = vmatpush1.bf16.msra.mxu0 0
  %2133 = vmatprep.subr.bf16.mxu0 0
  %2134 = vmatpush1.bf16.msra.mxu0 0
  %2135 = vmatprep.subr.bf16.mxu0 0
  %2136 = vmatpush1.bf16.msra.mxu0 0
  %2137 = vmatprep.subr.bf16.mxu0 0
  %2138 = vmatpush1.bf16.msra.mxu0 0
  %2139 = vmatprep.subr.bf16.mxu0 0
  %2140 = vmatpush1.bf16.msra.mxu0 0
  %2141 = vmatprep.subr.bf16.mxu0 0
  %2142 = vmatpush1.bf16.msra.mxu0 0
  %2143 = vmatprep.subr.bf16.mxu0 0
  %2144 = vmatpush1.bf16.msra.mxu0 0
  %2145 = vmatprep.subr.bf16.mxu0 0
  %2146 = vmatpush1.bf16.msra.mxu0 0
  %2147 = vmatprep.mubr.bf16.mxu0 0
  %2148 = vmatmul.mubr.bf16.gmra.mrb[0].mxu0 %v2070
  %v2149 = vpop.f32.mrb[0].mxu0
  %v2150 = vadd.f32 %v2110, %v2149
  %v2151 = vpop.f32.mrb[0].mxu0
  %v2152 = vpop.f32.mrb[0].mxu0
  %v2153 = vpop.f32.mrb[0].mxu0
  %2154 = vdwg.mxu0
  %v2188 = vunpack.c.l.b16 %v759
  %v2189 = vunpack.c.l.b16 %v760
  %v2190 = vunpack.c.l.b16 %v761
  %v2191 = vunpack.c.l.b16 %v762
  %v2192 = vunpack.c.l.b16 %v763
  %v2193 = vunpack.c.l.b16 %v764
  %v2194 = vunpack.c.l.b16 %v765
  %v2195 = vunpack.c.l.b16 %v766
  %v2196 = vunpack.c.l.b16 %v767
  %v2197 = vunpack.c.l.b16 %v768
  %v2198 = vunpack.c.l.b16 %v769
  %v2199 = vunpack.c.l.b16 %v770
  %v2200 = vunpack.c.l.b16 %v771
  %v2201 = vunpack.c.l.b16 %v772
  %v2202 = vunpack.c.l.b16 %v773
  %v2203 = vunpack.c.l.b16 %v774
  %v2204 = vunpack.c.l.b16 %v775
  %v2205 = vunpack.c.l.b16 %v776
  %v2206 = vunpack.c.l.b16 %v777
  %v2207 = vunpack.c.l.b16 %v778
  %v2208 = vunpack.c.l.b16 %v779
  %v2209 = vunpack.c.l.b16 %v780
  %v2210 = vunpack.c.l.b16 %v781
  %v2211 = vunpack.c.l.b16 %v782
  %v2212 = vunpack.c.l.b16 %v783
  %v2213 = vunpack.c.l.b16 %v784
  %v2214 = vunpack.c.l.b16 %v785
  %v2215 = vunpack.c.l.b16 %v786
  %v2216 = vunpack.c.l.b16 %v787
  %v2217 = vunpack.c.l.b16 %v788
  %v2218 = vunpack.c.l.b16 %v789
  %v2219 = vunpack.c.l.b16 %v790
  %v2220 = vunpack.c.l.b16 %v791
  %v2221 = vpack.c.b16 %v2189, %v2188
  %v2222 = vpack.c.b16 %v2191, %v2190
  %v2223 = vpack.c.b16 %v2193, %v2192
  %v2224 = vpack.c.b16 %v2195, %v2194
  %v2225 = vpack.c.b16 %v2197, %v2196
  %v2226 = vpack.c.b16 %v2199, %v2198
  %v2227 = vpack.c.b16 %v2201, %v2200
  %v2228 = vpack.c.b16 %v2203, %v2202
  %v2229 = vpack.c.b16 %v2205, %v2204
  %v2230 = vpack.c.b16 %v2207, %v2206
  %v2231 = vpack.c.b16 %v2209, %v2208
  %v2232 = vpack.c.b16 %v2211, %v2210
  %v2233 = vpack.c.b16 %v2213, %v2212
  %v2234 = vpack.c.b16 %v2215, %v2214
  %v2235 = vpack.c.b16 %v2217, %v2216
  %v2236 = vpack.c.b16 %v2219, %v2218
  %v2237 = vpack.c.b16 %v2220, %v2220
  %v2255 = vsel %vm957, %v521, 0
  %v2258 = vsel %vm961, %v2237, 0
  %2260 = vmatprep.subr.bf16.mxu0 0
  %2261 = vmatpush1.bf16.msra.mxu0 %v2221
  %2262 = vmatprep.subr.bf16.mxu0 0
  %2263 = vmatpush1.bf16.msra.mxu0 %v2222
  %2264 = vmatprep.subr.bf16.mxu0 0
  %2265 = vmatpush1.bf16.msra.mxu0 %v2223
  %2266 = vmatprep.subr.bf16.mxu0 0
  %2267 = vmatpush1.bf16.msra.mxu0 %v2224
  %2268 = vmatprep.subr.bf16.mxu0 0
  %2269 = vmatpush1.bf16.msra.mxu0 %v2225
  %2270 = vmatprep.subr.bf16.mxu0 0
  %2271 = vmatpush1.bf16.msra.mxu0 %v2226
  %2272 = vmatprep.subr.bf16.mxu0 0
  %2273 = vmatpush1.bf16.msra.mxu0 %v2227
  %2274 = vmatprep.subr.bf16.mxu0 0
  %2275 = vmatpush1.bf16.msra.mxu0 %v2228
  %2276 = vmatprep.subr.bf16.mxu0 0
  %2277 = vmatpush1.bf16.msra.mxu0 %v2229
  %2278 = vmatprep.subr.bf16.mxu0 0
  %2279 = vmatpush1.bf16.msra.mxu0 %v2230
  %2280 = vmatprep.subr.bf16.mxu0 0
  %2281 = vmatpush1.bf16.msra.mxu0 %v2231
  %2282 = vmatprep.subr.bf16.mxu0 0
  %2283 = vmatpush1.bf16.msra.mxu0 %v2232
  %2284 = vmatprep.subr.bf16.mxu0 0
  %2285 = vmatpush1.bf16.msra.mxu0 %v2233
  %2286 = vmatprep.subr.bf16.mxu0 0
  %2287 = vmatpush1.bf16.msra.mxu0 %v2234
  %2288 = vmatprep.subr.bf16.mxu0 0
  %2289 = vmatpush1.bf16.msra.mxu0 %v2235
  %2290 = vmatprep.subr.bf16.mxu0 0
  %2291 = vmatpush1.bf16.msra.mxu0 %v2236
  %2292 = vmatprep.mubr.bf16.mxu0 %v520
  %2293 = vmatmul.mubr.bf16.gmra.mrb[0].mxu0 %v519
  %v2294 = vpop.f32.mrb[0].mxu0
  %v2295 = vadd.f32 0.0, %v2294
  %v2296 = vpop.f32.mrb[0].mxu0
  %v2297 = vpop.f32.mrb[0].mxu0
  %v2298 = vpop.f32.mrb[0].mxu0
  %2299 = vdwg.mxu0
  %2300 = vmatprep.subr.bf16.mxu0 0
  %2301 = vmatpush1.bf16.msra.mxu0 %v2258
  %2302 = vmatprep.subr.bf16.mxu0 0
  %2303 = vmatpush1.bf16.msra.mxu0 0
  %2304 = vmatprep.subr.bf16.mxu0 0
  %2305 = vmatpush1.bf16.msra.mxu0 0
  %2306 = vmatprep.subr.bf16.mxu0 0
  %2307 = vmatpush1.bf16.msra.mxu0 0
  %2308 = vmatprep.subr.bf16.mxu0 0
  %2309 = vmatpush1.bf16.msra.mxu0 0
  %2310 = vmatprep.subr.bf16.mxu0 0
  %2311 = vmatpush1.bf16.msra.mxu0 0
  %2312 = vmatprep.subr.bf16.mxu0 0
  %2313 = vmatpush1.bf16.msra.mxu0 0
  %2314 = vmatprep.subr.bf16.mxu0 0
  %2315 = vmatpush1.bf16.msra.mxu0 0
  %2316 = vmatprep.subr.bf16.mxu0 0
  %2317 = vmatpush1.bf16.msra.mxu0 0
  %2318 = vmatprep.subr.bf16.mxu0 0
  %2319 = vmatpush1.bf16.msra.mxu0 0
  %2320 = vmatprep.subr.bf16.mxu0 0
  %2321 = vmatpush1.bf16.msra.mxu0 0
  %2322 = vmatprep.subr.bf16.mxu0 0
  %2323 = vmatpush1.bf16.msra.mxu0 0
  %2324 = vmatprep.subr.bf16.mxu0 0
  %2325 = vmatpush1.bf16.msra.mxu0 0
  %2326 = vmatprep.subr.bf16.mxu0 0
  %2327 = vmatpush1.bf16.msra.mxu0 0
  %2328 = vmatprep.subr.bf16.mxu0 0
  %2329 = vmatpush1.bf16.msra.mxu0 0
  %2330 = vmatprep.subr.bf16.mxu0 0
  %2331 = vmatpush1.bf16.msra.mxu0 0
  %2332 = vmatprep.mubr.bf16.mxu0 0
  %2333 = vmatmul.mubr.bf16.gmra.mrb[0].mxu0 %v2255
  %v2334 = vpop.f32.mrb[0].mxu0
  %v2335 = vadd.f32 %v2295, %v2334
  %v2336 = vpop.f32.mrb[0].mxu0
  %v2337 = vpop.f32.mrb[0].mxu0
  %v2338 = vpop.f32.mrb[0].mxu0
  %2339 = vdwg.mxu0
  %v2373 = vunpack.c.l.b16 %v792
  %v2374 = vunpack.c.l.b16 %v793
  %v2375 = vunpack.c.l.b16 %v794
  %v2376 = vunpack.c.l.b16 %v795
  %v2377 = vunpack.c.l.b16 %v796
  %v2378 = vunpack.c.l.b16 %v797
  %v2379 = vunpack.c.l.b16 %v798
  %v2380 = vunpack.c.l.b16 %v799
  %v2381 = vunpack.c.l.b16 %v800
  %v2382 = vunpack.c.l.b16 %v801
  %v2383 = vunpack.c.l.b16 %v802
  %v2384 = vunpack.c.l.b16 %v803
  %v2385 = vunpack.c.l.b16 %v804
  %v2386 = vunpack.c.l.b16 %v805
  %v2387 = vunpack.c.l.b16 %v806
  %v2388 = vunpack.c.l.b16 %v807
  %v2389 = vunpack.c.l.b16 %v808
  %v2390 = vunpack.c.l.b16 %v809
  %v2391 = vunpack.c.l.b16 %v810
  %v2392 = vunpack.c.l.b16 %v811
  %v2393 = vunpack.c.l.b16 %v812
  %v2394 = vunpack.c.l.b16 %v813
  %v2395 = vunpack.c.l.b16 %v814
  %v2396 = vunpack.c.l.b16 %v815
  %v2397 = vunpack.c.l.b16 %v816
  %v2398 = vunpack.c.l.b16 %v817
  %v2399 = vunpack.c.l.b16 %v818
  %v2400 = vunpack.c.l.b16 %v819
  %v2401 = vunpack.c.l.b16 %v820
  %v2402 = vunpack.c.l.b16 %v821
  %v2403 = vunpack.c.l.b16 %v822
  %v2404 = vunpack.c.l.b16 %v823
  %v2405 = vunpack.c.l.b16 %v824
  %v2406 = vpack.c.b16 %v2374, %v2373
  %v2407 = vpack.c.b16 %v2376, %v2375
  %v2408 = vpack.c.b16 %v2378, %v2377
  %v2409 = vpack.c.b16 %v2380, %v2379
  %v2410 = vpack.c.b16 %v2382, %v2381
  %v2411 = vpack.c.b16 %v2384, %v2383
  %v2412 = vpack.c.b16 %v2386, %v2385
  %v2413 = vpack.c.b16 %v2388, %v2387
  %v2414 = vpack.c.b16 %v2390, %v2389
  %v2415 = vpack.c.b16 %v2392, %v2391
  %v2416 = vpack.c.b16 %v2394, %v2393
  %v2417 = vpack.c.b16 %v2396, %v2395
  %v2418 = vpack.c.b16 %v2398, %v2397
  %v2419 = vpack.c.b16 %v2400, %v2399
  %v2420 = vpack.c.b16 %v2402, %v2401
  %v2421 = vpack.c.b16 %v2404, %v2403
  %v2422 = vpack.c.b16 %v2405, %v2405
  %v2440 = vsel %vm957, %v524, 0
  %v2443 = vsel %vm961, %v2422, 0
  %2445 = vmatprep.subr.bf16.mxu0 0
  %2446 = vmatpush1.bf16.msra.mxu0 %v2406
  %2447 = vmatprep.subr.bf16.mxu0 0
  %2448 = vmatpush1.bf16.msra.mxu0 %v2407
  %2449 = vmatprep.subr.bf16.mxu0 0
  %2450 = vmatpush1.bf16.msra.mxu0 %v2408
  %2451 = vmatprep.subr.bf16.mxu0 0
  %2452 = vmatpush1.bf16.msra.mxu0 %v2409
  %2453 = vmatprep.subr.bf16.mxu0 0
  %2454 = vmatpush1.bf16.msra.mxu0 %v2410
  %2455 = vmatprep.subr.bf16.mxu0 0
  %2456 = vmatpush1.bf16.msra.mxu0 %v2411
  %2457 = vmatprep.subr.bf16.mxu0 0
  %2458 = vmatpush1.bf16.msra.mxu0 %v2412
  %2459 = vmatprep.subr.bf16.mxu0 0
  %2460 = vmatpush1.bf16.msra.mxu0 %v2413
  %2461 = vmatprep.subr.bf16.mxu0 0
  %2462 = vmatpush1.bf16.msra.mxu0 %v2414
  %2463 = vmatprep.subr.bf16.mxu0 0
  %2464 = vmatpush1.bf16.msra.mxu0 %v2415
  %2465 = vmatprep.subr.bf16.mxu0 0
  %2466 = vmatpush1.bf16.msra.mxu0 %v2416
  %2467 = vmatprep.subr.bf16.mxu0 0
  %2468 = vmatpush1.bf16.msra.mxu0 %v2417
  %2469 = vmatprep.subr.bf16.mxu0 0
  %2470 = vmatpush1.bf16.msra.mxu0 %v2418
  %2471 = vmatprep.subr.bf16.mxu0 0
  %2472 = vmatpush1.bf16.msra.mxu0 %v2419
  %2473 = vmatprep.subr.bf16.mxu0 0
  %2474 = vmatpush1.bf16.msra.mxu0 %v2420
  %2475 = vmatprep.subr.bf16.mxu0 0
  %2476 = vmatpush1.bf16.msra.mxu0 %v2421
  %2477 = vmatprep.mubr.bf16.mxu0 %v523
  %2478 = vmatmul.mubr.bf16.gmra.mrb[0].mxu0 %v522
  %v2479 = vpop.f32.mrb[0].mxu0
  %v2480 = vadd.f32 0.0, %v2479
  %v2481 = vpop.f32.mrb[0].mxu0
  %v2482 = vpop.f32.mrb[0].mxu0
  %v2483 = vpop.f32.mrb[0].mxu0
  %2484 = vdwg.mxu0
  %2485 = vmatprep.subr.bf16.mxu0 0
  %2486 = vmatpush1.bf16.msra.mxu0 %v2443
  %2487 = vmatprep.subr.bf16.mxu0 0
  %2488 = vmatpush1.bf16.msra.mxu0 0
  %2489 = vmatprep.subr.bf16.mxu0 0
  %2490 = vmatpush1.bf16.msra.mxu0 0
  %2491 = vmatprep.subr.bf16.mxu0 0
  %2492 = vmatpush1.bf16.msra.mxu0 0
  %2493 = vmatprep.subr.bf16.mxu0 0
  %2494 = vmatpush1.bf16.msra.mxu0 0
  %2495 = vmatprep.subr.bf16.mxu0 0
  %2496 = vmatpush1.bf16.msra.mxu0 0
  %2497 = vmatprep.subr.bf16.mxu0 0
  %2498 = vmatpush1.bf16.msra.mxu0 0
  %2499 = vmatprep.subr.bf16.mxu0 0
  %2500 = vmatpush1.bf16.msra.mxu0 0
  %2501 = vmatprep.subr.bf16.mxu0 0
  %2502 = vmatpush1.bf16.msra.mxu0 0
  %2503 = vmatprep.subr.bf16.mxu0 0
  %2504 = vmatpush1.bf16.msra.mxu0 0
  %2505 = vmatprep.subr.bf16.mxu0 0
  %2506 = vmatpush1.bf16.msra.mxu0 0
  %2507 = vmatprep.subr.bf16.mxu0 0
  %2508 = vmatpush1.bf16.msra.mxu0 0
  %2509 = vmatprep.subr.bf16.mxu0 0
  %2510 = vmatpush1.bf16.msra.mxu0 0
  %2511 = vmatprep.subr.bf16.mxu0 0
  %2512 = vmatpush1.bf16.msra.mxu0 0
  %2513 = vmatprep.subr.bf16.mxu0 0
  %2514 = vmatpush1.bf16.msra.mxu0 0
  %2515 = vmatprep.subr.bf16.mxu0 0
  %2516 = vmatpush1.bf16.msra.mxu0 0
  %2517 = vmatprep.mubr.bf16.mxu0 0
  %2518 = vmatmul.mubr.bf16.gmra.mrb[0].mxu0 %v2440
  %v2519 = vpop.f32.mrb[0].mxu0
  %v2520 = vadd.f32 %v2480, %v2519
  %v2521 = vpop.f32.mrb[0].mxu0
  %v2522 = vpop.f32.mrb[0].mxu0
  %v2523 = vpop.f32.mrb[0].mxu0
  %2524 = vdwg.mxu0
  %v2558 = vunpack.c.l.b16 %v825
  %v2559 = vunpack.c.l.b16 %v826
  %v2560 = vunpack.c.l.b16 %v827
  %v2561 = vunpack.c.l.b16 %v828
  %v2562 = vunpack.c.l.b16 %v829
  %v2563 = vunpack.c.l.b16 %v830
  %v2564 = vunpack.c.l.b16 %v831
  %v2565 = vunpack.c.l.b16 %v832
  %v2566 = vunpack.c.l.b16 %v833
  %v2567 = vunpack.c.l.b16 %v834
  %v2568 = vunpack.c.l.b16 %v835
  %v2569 = vunpack.c.l.b16 %v836
  %v2570 = vunpack.c.l.b16 %v837
  %v2571 = vunpack.c.l.b16 %v838
  %v2572 = vunpack.c.l.b16 %v839
  %v2573 = vunpack.c.l.b16 %v840
  %v2574 = vunpack.c.l.b16 %v841
  %v2575 = vunpack.c.l.b16 %v842
  %v2576 = vunpack.c.l.b16 %v843
  %v2577 = vunpack.c.l.b16 %v844
  %v2578 = vunpack.c.l.b16 %v845
  %v2579 = vunpack.c.l.b16 %v846
  %v2580 = vunpack.c.l.b16 %v847
  %v2581 = vunpack.c.l.b16 %v848
  %v2582 = vunpack.c.l.b16 %v849
  %v2583 = vunpack.c.l.b16 %v850
  %v2584 = vunpack.c.l.b16 %v851
  %v2585 = vunpack.c.l.b16 %v852
  %v2586 = vunpack.c.l.b16 %v853
  %v2587 = vunpack.c.l.b16 %v854
  %v2588 = vunpack.c.l.b16 %v855
  %v2589 = vunpack.c.l.b16 %v856
  %v2590 = vunpack.c.l.b16 %v857
  %v2591 = vpack.c.b16 %v2559, %v2558
  %v2592 = vpack.c.b16 %v2561, %v2560
  %v2593 = vpack.c.b16 %v2563, %v2562
  %v2594 = vpack.c.b16 %v2565, %v2564
  %v2595 = vpack.c.b16 %v2567, %v2566
  %v2596 = vpack.c.b16 %v2569, %v2568
  %v2597 = vpack.c.b16 %v2571, %v2570
  %v2598 = vpack.c.b16 %v2573, %v2572
  %v2599 = vpack.c.b16 %v2575, %v2574
  %v2600 = vpack.c.b16 %v2577, %v2576
  %v2601 = vpack.c.b16 %v2579, %v2578
  %v2602 = vpack.c.b16 %v2581, %v2580
  %v2603 = vpack.c.b16 %v2583, %v2582
  %v2604 = vpack.c.b16 %v2585, %v2584
  %v2605 = vpack.c.b16 %v2587, %v2586
  %v2606 = vpack.c.b16 %v2589, %v2588
  %v2607 = vpack.c.b16 %v2590, %v2590
  %v2625 = vsel %vm957, %v527, 0
  %v2628 = vsel %vm961, %v2607, 0
  %2630 = vmatprep.subr.bf16.mxu0 0
  %2631 = vmatpush1.bf16.msra.mxu0 %v2591
  %2632 = vmatprep.subr.bf16.mxu0 0
  %2633 = vmatpush1.bf16.msra.mxu0 %v2592
  %2634 = vmatprep.subr.bf16.mxu0 0
  %2635 = vmatpush1.bf16.msra.mxu0 %v2593
  %2636 = vmatprep.subr.bf16.mxu0 0
  %2637 = vmatpush1.bf16.msra.mxu0 %v2594
  %2638 = vmatprep.subr.bf16.mxu0 0
  %2639 = vmatpush1.bf16.msra.mxu0 %v2595
  %2640 = vmatprep.subr.bf16.mxu0 0
  %2641 = vmatpush1.bf16.msra.mxu0 %v2596
  %2642 = vmatprep.subr.bf16.mxu0 0
  %2643 = vmatpush1.bf16.msra.mxu0 %v2597
  %2644 = vmatprep.subr.bf16.mxu0 0
  %2645 = vmatpush1.bf16.msra.mxu0 %v2598
  %2646 = vmatprep.subr.bf16.mxu0 0
  %2647 = vmatpush1.bf16.msra.mxu0 %v2599
  %2648 = vmatprep.subr.bf16.mxu0 0
  %2649 = vmatpush1.bf16.msra.mxu0 %v2600
  %2650 = vmatprep.subr.bf16.mxu0 0
  %2651 = vmatpush1.bf16.msra.mxu0 %v2601
  %2652 = vmatprep.subr.bf16.mxu0 0
  %2653 = vmatpush1.bf16.msra.mxu0 %v2602
  %2654 = vmatprep.subr.bf16.mxu0 0
  %2655 = vmatpush1.bf16.msra.mxu0 %v2603
  %2656 = vmatprep.subr.bf16.mxu0 0
  %2657 = vmatpush1.bf16.msra.mxu0 %v2604
  %2658 = vmatprep.subr.bf16.mxu0 0
  %2659 = vmatpush1.bf16.msra.mxu0 %v2605
  %2660 = vmatprep.subr.bf16.mxu0 0
  %2661 = vmatpush1.bf16.msra.mxu0 %v2606
  %2662 = vmatprep.mubr.bf16.mxu0 %v526
  %2663 = vmatmul.mubr.bf16.gmra.mrb[0].mxu0 %v525
  %v2664 = vpop.f32.mrb[0].mxu0
  %v2665 = vadd.f32 0.0, %v2664
  %v2666 = vpop.f32.mrb[0].mxu0
  %v2667 = vpop.f32.mrb[0].mxu0
  %v2668 = vpop.f32.mrb[0].mxu0
  %2669 = vdwg.mxu0
  %2670 = vmatprep.subr.bf16.mxu0 0
  %2671 = vmatpush1.bf16.msra.mxu0 %v2628
  %2672 = vmatprep.subr.bf16.mxu0 0
  %2673 = vmatpush1.bf16.msra.mxu0 0
  %2674 = vmatprep.subr.bf16.mxu0 0
  %2675 = vmatpush1.bf16.msra.mxu0 0
  %2676 = vmatprep.subr.bf16.mxu0 0
  %2677 = vmatpush1.bf16.msra.mxu0 0
  %2678 = vmatprep.subr.bf16.mxu0 0
  %2679 = vmatpush1.bf16.msra.mxu0 0
  %2680 = vmatprep.subr.bf16.mxu0 0
  %2681 = vmatpush1.bf16.msra.mxu0 0
  %2682 = vmatprep.subr.bf16.mxu0 0
  %2683 = vmatpush1.bf16.msra.mxu0 0
  %2684 = vmatprep.subr.bf16.mxu0 0
  %2685 = vmatpush1.bf16.msra.mxu0 0
  %2686 = vmatprep.subr.bf16.mxu0 0
  %2687 = vmatpush1.bf16.msra.mxu0 0
  %2688 = vmatprep.subr.bf16.mxu0 0
  %2689 = vmatpush1.bf16.msra.mxu0 0
  %2690 = vmatprep.subr.bf16.mxu0 0
  %2691 = vmatpush1.bf16.msra.mxu0 0
  %2692 = vmatprep.subr.bf16.mxu0 0
  %2693 = vmatpush1.bf16.msra.mxu0 0
  %2694 = vmatprep.subr.bf16.mxu0 0
  %2695 = vmatpush1.bf16.msra.mxu0 0
  %2696 = vmatprep.subr.bf16.mxu0 0
  %2697 = vmatpush1.bf16.msra.mxu0 0
  %2698 = vmatprep.subr.bf16.mxu0 0
  %2699 = vmatpush1.bf16.msra.mxu0 0
  %2700 = vmatprep.subr.bf16.mxu0 0
  %2701 = vmatpush1.bf16.msra.mxu0 0
  %2702 = vmatprep.mubr.bf16.mxu0 0
  %2703 = vmatmul.mubr.bf16.gmra.mrb[0].mxu0 %v2625
  %v2704 = vpop.f32.mrb[0].mxu0
  %v2705 = vadd.f32 %v2665, %v2704
  %v2706 = vpop.f32.mrb[0].mxu0
  %v2707 = vpop.f32.mrb[0].mxu0
  %v2708 = vpop.f32.mrb[0].mxu0
  %2709 = vdwg.mxu0
  %v2710 = vadd.f32 %v1040, %v1225
  %v2711 = vadd.f32 %v2710, %v1410
  %v2712 = vadd.f32 %v2711, %v1595
  %v2713 = vadd.f32 %v2712, %v1780
  %v2714 = vadd.f32 %v2713, %v1965
  %v2715 = vadd.f32 %v2714, %v2150
  %v2716 = vadd.f32 %v2715, %v2335
  %v2717 = vadd.f32 %v2716, %v2520
  %v2718 = vadd.f32 %v2717, %v2705
  %v2719 = vld [vmem:[%s6] sm:$0x1]
  %v2720 = vlaneseq
  %v2721 = vshrl.u32 %v2720, 7
  %v2722 = vsub.s32 0, %v2721
  %v2723 = vrot.slane %v2719, %v2722
  %v2724 = vadd.f32 %v2718, %v2723
  %v2725 = vmax.f32 %v2724, 0.0
  %v2726 = vld [vmem:[%s1] sm:$0xff]
  %v2727 = vadd.f32 %v2725, %v2726
  %v2728 = vpack.c.bf16 %v2727, %v2727
  %v2729 = vld [vmem:[%s5] sm:$0xf]
  %v2730 = vld [vmem:[%s5 + $0x4] sm:$0xf]
  %v2731 = vld [vmem:[%s5 + $0x8] sm:$0xf]
  %v2732 = vld [vmem:[%s5 + $0xc] sm:$0xf]
  %v2733 = vld [vmem:[%s5 + $0x10] sm:$0xf]
  %v2734 = vld [vmem:[%s5 + $0x14] sm:$0xf]
  %v2735 = vld [vmem:[%s5 + $0x18] sm:$0xf]
  %v2736 = vld [vmem:[%s5 + $0x1c] sm:$0xf]
  %v2737 = vld [vmem:[%s5 + $0x20] sm:$0xf]
  %v2738 = vld [vmem:[%s5 + $0x24] sm:$0xf]
  %v2739 = vld [vmem:[%s5 + $0x28] sm:$0xf]
  %v2740 = vld [vmem:[%s5 + $0x2c] sm:$0xf]
  %v2741 = vld [vmem:[%s5 + $0x30] sm:$0xf]
  %v2742 = vld [vmem:[%s5 + $0x34] sm:$0xf]
  %v2743 = vld [vmem:[%s5 + $0x38] sm:$0xf]
  %v2744 = vld [vmem:[%s5 + $0x3c] sm:$0xf]
  %v2745 = vld [vmem:[%s6 + $0x1] sm:$0x1]
  %v2746 = vlaneseq
  %v2747 = vshrl.u32 %v2746, 7
  %v2748 = vsub.s32 0, %v2747
  %v2749 = vrot.slane %v2745, %v2748
  %v2766 = vunpack.c.l.b16 %v2729
  %v2767 = vunpack.c.l.b16 %v2730
  %v2768 = vunpack.c.l.b16 %v2731
  %v2769 = vunpack.c.l.b16 %v2732
  %v2770 = vunpack.c.l.b16 %v2733
  %v2771 = vunpack.c.l.b16 %v2734
  %v2772 = vunpack.c.l.b16 %v2735
  %v2773 = vunpack.c.l.b16 %v2736
  %v2774 = vunpack.c.l.b16 %v2737
  %v2775 = vunpack.c.l.b16 %v2738
  %v2776 = vunpack.c.l.b16 %v2739
  %v2777 = vunpack.c.l.b16 %v2740
  %v2778 = vunpack.c.l.b16 %v2741
  %v2779 = vunpack.c.l.b16 %v2742
  %v2780 = vunpack.c.l.b16 %v2743
  %v2781 = vunpack.c.l.b16 %v2744
  %v2782 = vpack.c.b16 %v2767, %v2766
  %v2783 = vpack.c.b16 %v2769, %v2768
  %v2784 = vpack.c.b16 %v2771, %v2770
  %v2785 = vpack.c.b16 %v2773, %v2772
  %v2786 = vpack.c.b16 %v2775, %v2774
  %v2787 = vpack.c.b16 %v2777, %v2776
  %v2788 = vpack.c.b16 %v2779, %v2778
  %v2789 = vpack.c.b16 %v2781, %v2780
  %2798 = vmatprep.subr.bf16.mxu0 0
  %2799 = vmatpush1.bf16.msra.mxu0 %v2782
  %2800 = vmatprep.subr.bf16.mxu0 0
  %2801 = vmatpush1.bf16.msra.mxu0 %v2783
  %2802 = vmatprep.subr.bf16.mxu0 0
  %2803 = vmatpush1.bf16.msra.mxu0 %v2784
  %2804 = vmatprep.subr.bf16.mxu0 0
  %2805 = vmatpush1.bf16.msra.mxu0 %v2785
  %2806 = vmatprep.subr.bf16.mxu0 0
  %2807 = vmatpush1.bf16.msra.mxu0 %v2786
  %2808 = vmatprep.subr.bf16.mxu0 0
  %2809 = vmatpush1.bf16.msra.mxu0 %v2787
  %2810 = vmatprep.subr.bf16.mxu0 0
  %2811 = vmatpush1.bf16.msra.mxu0 %v2788
  %2812 = vmatprep.subr.bf16.mxu0 0
  %2813 = vmatpush1.bf16.msra.mxu0 %v2789
  %2814 = vmatprep.subr.bf16.mxu0 0
  %2815 = vmatpush1.bf16.msra.mxu0 0
  %2816 = vmatprep.subr.bf16.mxu0 0
  %2817 = vmatpush1.bf16.msra.mxu0 0
  %2818 = vmatprep.subr.bf16.mxu0 0
  %2819 = vmatpush1.bf16.msra.mxu0 0
  %2820 = vmatprep.subr.bf16.mxu0 0
  %2821 = vmatpush1.bf16.msra.mxu0 0
  %2822 = vmatprep.subr.bf16.mxu0 0
  %2823 = vmatpush1.bf16.msra.mxu0 0
  %2824 = vmatprep.subr.bf16.mxu0 0
  %2825 = vmatpush1.bf16.msra.mxu0 0
  %2826 = vmatprep.subr.bf16.mxu0 0
  %2827 = vmatpush1.bf16.msra.mxu0 0
  %2828 = vmatprep.subr.bf16.mxu0 0
  %2829 = vmatpush1.bf16.msra.mxu0 0
  %2830 = vmatprep.mubr.bf16.mxu0 0
  %2831 = vmatmul.mubr.bf16.gmra.mrb[0].mxu0 %v2728
  %v2832 = vpop.f32.mrb[0].mxu0
  %v2833 = vadd.f32 %v2749, %v2832
  %v2834 = vpop.f32.mrb[0].mxu0
  %v2835 = vpop.f32.mrb[0].mxu0
  %v2836 = vpop.f32.mrb[0].mxu0
  %2837 = vdwg.mxu0
  %v2838 = vmax.f32 %v2833, 0.0
  %v2839 = vpack.c.bf16 %v2838, %v2838
  %s2840 = scalar_lea.vmem %s5, 64
  %v2841 = vld [vmem:[%s2840] sm:$0xf]
  %v2842 = vld [vmem:[%s2840 + $0x4] sm:$0xf]
  %v2843 = vld [vmem:[%s2840 + $0x8] sm:$0xf]
  %v2844 = vld [vmem:[%s2840 + $0xc] sm:$0xf]
  %v2845 = vld [vmem:[%s2840 + $0x10] sm:$0xf]
  %v2846 = vld [vmem:[%s2840 + $0x14] sm:$0xf]
  %v2847 = vld [vmem:[%s2840 + $0x18] sm:$0xf]
  %v2848 = vld [vmem:[%s2840 + $0x1c] sm:$0xf]
  %v2849 = vld [vmem:[%s2840 + $0x20] sm:$0xf]
  %v2850 = vld [vmem:[%s2840 + $0x24] sm:$0xf]
  %v2851 = vld [vmem:[%s2840 + $0x28] sm:$0xf]
  %v2852 = vld [vmem:[%s2840 + $0x2c] sm:$0xf]
  %v2853 = vld [vmem:[%s2840 + $0x30] sm:$0xf]
  %v2854 = vld [vmem:[%s2840 + $0x34] sm:$0xf]
  %v2855 = vld [vmem:[%s2840 + $0x38] sm:$0xf]
  %v2856 = vld [vmem:[%s2840 + $0x3c] sm:$0xf]
  %v2857 = vld [vmem:[%s6 + $0x2] sm:$0x1]
  %v2858 = vlaneseq
  %v2859 = vshrl.u32 %v2858, 7
  %v2860 = vsub.s32 0, %v2859
  %v2861 = vrot.slane %v2857, %v2860
  %v2878 = vunpack.c.l.b16 %v2841
  %v2879 = vunpack.c.l.b16 %v2842
  %v2880 = vunpack.c.l.b16 %v2843
  %v2881 = vunpack.c.l.b16 %v2844
  %v2882 = vunpack.c.l.b16 %v2845
  %v2883 = vunpack.c.l.b16 %v2846
  %v2884 = vunpack.c.l.b16 %v2847
  %v2885 = vunpack.c.l.b16 %v2848
  %v2886 = vunpack.c.l.b16 %v2849
  %v2887 = vunpack.c.l.b16 %v2850
  %v2888 = vunpack.c.l.b16 %v2851
  %v2889 = vunpack.c.l.b16 %v2852
  %v2890 = vunpack.c.l.b16 %v2853
  %v2891 = vunpack.c.l.b16 %v2854
  %v2892 = vunpack.c.l.b16 %v2855
  %v2893 = vunpack.c.l.b16 %v2856
  %v2894 = vpack.c.b16 %v2879, %v2878
  %v2895 = vpack.c.b16 %v2881, %v2880
  %v2896 = vpack.c.b16 %v2883, %v2882
  %v2897 = vpack.c.b16 %v2885, %v2884
  %v2898 = vpack.c.b16 %v2887, %v2886
  %v2899 = vpack.c.b16 %v2889, %v2888
  %v2900 = vpack.c.b16 %v2891, %v2890
  %v2901 = vpack.c.b16 %v2893, %v2892
  %2910 = vmatprep.subr.bf16.mxu0 0
  %2911 = vmatpush1.bf16.msra.mxu0 %v2894
  %2912 = vmatprep.subr.bf16.mxu0 0
  %2913 = vmatpush1.bf16.msra.mxu0 %v2895
  %2914 = vmatprep.subr.bf16.mxu0 0
  %2915 = vmatpush1.bf16.msra.mxu0 %v2896
  %2916 = vmatprep.subr.bf16.mxu0 0
  %2917 = vmatpush1.bf16.msra.mxu0 %v2897
  %2918 = vmatprep.subr.bf16.mxu0 0
  %2919 = vmatpush1.bf16.msra.mxu0 %v2898
  %2920 = vmatprep.subr.bf16.mxu0 0
  %2921 = vmatpush1.bf16.msra.mxu0 %v2899
  %2922 = vmatprep.subr.bf16.mxu0 0
  %2923 = vmatpush1.bf16.msra.mxu0 %v2900
  %2924 = vmatprep.subr.bf16.mxu0 0
  %2925 = vmatpush1.bf16.msra.mxu0 %v2901
  %2926 = vmatprep.subr.bf16.mxu0 0
  %2927 = vmatpush1.bf16.msra.mxu0 0
  %2928 = vmatprep.subr.bf16.mxu0 0
  %2929 = vmatpush1.bf16.msra.mxu0 0
  %2930 = vmatprep.subr.bf16.mxu0 0
  %2931 = vmatpush1.bf16.msra.mxu0 0
  %2932 = vmatprep.subr.bf16.mxu0 0
  %2933 = vmatpush1.bf16.msra.mxu0 0
  %2934 = vmatprep.subr.bf16.mxu0 0
  %2935 = vmatpush1.bf16.msra.mxu0 0
  %2936 = vmatprep.subr.bf16.mxu0 0
  %2937 = vmatpush1.bf16.msra.mxu0 0
  %2938 = vmatprep.subr.bf16.mxu0 0
  %2939 = vmatpush1.bf16.msra.mxu0 0
  %2940 = vmatprep.subr.bf16.mxu0 0
  %2941 = vmatpush1.bf16.msra.mxu0 0
  %2942 = vmatprep.mubr.bf16.mxu0 0
  %2943 = vmatmul.mubr.bf16.gmra.mrb[0].mxu0 %v2839
  %v2944 = vpop.f32.mrb[0].mxu0
  %v2945 = vadd.f32 %v2861, %v2944
  %v2946 = vpop.f32.mrb[0].mxu0
  %v2947 = vpop.f32.mrb[0].mxu0
  %v2948 = vpop.f32.mrb[0].mxu0
  %2949 = vdwg.mxu0
  %v2950 = vmax.f32 %v2945, 0.0
  %v2951 = vpack.c.bf16 %v2950, %v2950
  %s2952 = scalar_lea.vmem %s5, 128
  %v2953 = vld [vmem:[%s2952] sm:$0xf]
  %v2954 = vld [vmem:[%s2952 + $0x4] sm:$0xf]
  %v2955 = vld [vmem:[%s2952 + $0x8] sm:$0xf]
  %v2956 = vld [vmem:[%s2952 + $0xc] sm:$0xf]
  %v2957 = vld [vmem:[%s2952 + $0x10] sm:$0xf]
  %v2958 = vld [vmem:[%s2952 + $0x14] sm:$0xf]
  %v2959 = vld [vmem:[%s2952 + $0x18] sm:$0xf]
  %v2960 = vld [vmem:[%s2952 + $0x1c] sm:$0xf]
  %v2961 = vld [vmem:[%s2952 + $0x20] sm:$0xf]
  %v2962 = vld [vmem:[%s2952 + $0x24] sm:$0xf]
  %v2963 = vld [vmem:[%s2952 + $0x28] sm:$0xf]
  %v2964 = vld [vmem:[%s2952 + $0x2c] sm:$0xf]
  %v2965 = vld [vmem:[%s2952 + $0x30] sm:$0xf]
  %v2966 = vld [vmem:[%s2952 + $0x34] sm:$0xf]
  %v2967 = vld [vmem:[%s2952 + $0x38] sm:$0xf]
  %v2968 = vld [vmem:[%s2952 + $0x3c] sm:$0xf]
  %v2969 = vld [vmem:[%s6 + $0x3] sm:$0x1]
  %v2970 = vlaneseq
  %v2971 = vshrl.u32 %v2970, 7
  %v2972 = vsub.s32 0, %v2971
  %v2973 = vrot.slane %v2969, %v2972
  %v2990 = vunpack.c.l.b16 %v2953
  %v2991 = vunpack.c.l.b16 %v2954
  %v2992 = vunpack.c.l.b16 %v2955
  %v2993 = vunpack.c.l.b16 %v2956
  %v2994 = vunpack.c.l.b16 %v2957
  %v2995 = vunpack.c.l.b16 %v2958
  %v2996 = vunpack.c.l.b16 %v2959
  %v2997 = vunpack.c.l.b16 %v2960
  %v2998 = vunpack.c.l.b16 %v2961
  %v2999 = vunpack.c.l.b16 %v2962
  %v3000 = vunpack.c.l.b16 %v2963
  %v3001 = vunpack.c.l.b16 %v2964
  %v3002 = vunpack.c.l.b16 %v2965
  %v3003 = vunpack.c.l.b16 %v2966
  %v3004 = vunpack.c.l.b16 %v2967
  %v3005 = vunpack.c.l.b16 %v2968
  %v3006 = vpack.c.b16 %v2991, %v2990
  %v3007 = vpack.c.b16 %v2993, %v2992
  %v3008 = vpack.c.b16 %v2995, %v2994
  %v3009 = vpack.c.b16 %v2997, %v2996
  %v3010 = vpack.c.b16 %v2999, %v2998
  %v3011 = vpack.c.b16 %v3001, %v3000
  %v3012 = vpack.c.b16 %v3003, %v3002
  %v3013 = vpack.c.b16 %v3005, %v3004
  %3022 = vmatprep.subr.bf16.mxu0 0
  %3023 = vmatpush1.bf16.msra.mxu0 %v3006
  %3024 = vmatprep.subr.bf16.mxu0 0
  %3025 = vmatpush1.bf16.msra.mxu0 %v3007
  %3026 = vmatprep.subr.bf16.mxu0 0
  %3027 = vmatpush1.bf16.msra.mxu0 %v3008
  %3028 = vmatprep.subr.bf16.mxu0 0
  %3029 = vmatpush1.bf16.msra.mxu0 %v3009
  %3030 = vmatprep.subr.bf16.mxu0 0
  %3031 = vmatpush1.bf16.msra.mxu0 %v3010
  %3032 = vmatprep.subr.bf16.mxu0 0
  %3033 = vmatpush1.bf16.msra.mxu0 %v3011
  %3034 = vmatprep.subr.bf16.mxu0 0
  %3035 = vmatpush1.bf16.msra.mxu0 %v3012
  %3036 = vmatprep.subr.bf16.mxu0 0
  %3037 = vmatpush1.bf16.msra.mxu0 %v3013
  %3038 = vmatprep.subr.bf16.mxu0 0
  %3039 = vmatpush1.bf16.msra.mxu0 0
  %3040 = vmatprep.subr.bf16.mxu0 0
  %3041 = vmatpush1.bf16.msra.mxu0 0
  %3042 = vmatprep.subr.bf16.mxu0 0
  %3043 = vmatpush1.bf16.msra.mxu0 0
  %3044 = vmatprep.subr.bf16.mxu0 0
  %3045 = vmatpush1.bf16.msra.mxu0 0
  %3046 = vmatprep.subr.bf16.mxu0 0
  %3047 = vmatpush1.bf16.msra.mxu0 0
  %3048 = vmatprep.subr.bf16.mxu0 0
  %3049 = vmatpush1.bf16.msra.mxu0 0
  %3050 = vmatprep.subr.bf16.mxu0 0
  %3051 = vmatpush1.bf16.msra.mxu0 0
  %3052 = vmatprep.subr.bf16.mxu0 0
  %3053 = vmatpush1.bf16.msra.mxu0 0
  %3054 = vmatprep.mubr.bf16.mxu0 0
  %3055 = vmatmul.mubr.bf16.gmra.mrb[0].mxu0 %v2951
  %v3056 = vpop.f32.mrb[0].mxu0
  %v3057 = vadd.f32 %v2973, %v3056
  %v3058 = vpop.f32.mrb[0].mxu0
  %v3059 = vpop.f32.mrb[0].mxu0
  %v3060 = vpop.f32.mrb[0].mxu0
  %3061 = vdwg.mxu0
  %v3062 = vmax.f32 %v3057, 0.0
  %v3063 = vpack.c.bf16 %v3062, %v3062
  %s3064 = scalar_lea.vmem %s5, 192
  %v3065 = vld [vmem:[%s3064] sm:$0xf]
  %v3066 = vld [vmem:[%s3064 + $0x4] sm:$0xf]
  %v3067 = vld [vmem:[%s3064 + $0x8] sm:$0xf]
  %v3068 = vld [vmem:[%s3064 + $0xc] sm:$0xf]
  %v3069 = vld [vmem:[%s3064 + $0x10] sm:$0xf]
  %v3070 = vld [vmem:[%s3064 + $0x14] sm:$0xf]
  %v3071 = vld [vmem:[%s3064 + $0x18] sm:$0xf]
  %v3072 = vld [vmem:[%s3064 + $0x1c] sm:$0xf]
  %v3073 = vld [vmem:[%s3064 + $0x20] sm:$0xf]
  %v3074 = vld [vmem:[%s3064 + $0x24] sm:$0xf]
  %v3075 = vld [vmem:[%s3064 + $0x28] sm:$0xf]
  %v3076 = vld [vmem:[%s3064 + $0x2c] sm:$0xf]
  %v3077 = vld [vmem:[%s3064 + $0x30] sm:$0xf]
  %v3078 = vld [vmem:[%s3064 + $0x34] sm:$0xf]
  %v3079 = vld [vmem:[%s3064 + $0x38] sm:$0xf]
  %v3080 = vld [vmem:[%s3064 + $0x3c] sm:$0xf]
  %v3081 = vld [vmem:[%s6 + $0x4] sm:$0x1]
  %v3082 = vlaneseq
  %v3083 = vshrl.u32 %v3082, 7
  %v3084 = vsub.s32 0, %v3083
  %v3085 = vrot.slane %v3081, %v3084
  %v3102 = vunpack.c.l.b16 %v3065
  %v3103 = vunpack.c.l.b16 %v3066
  %v3104 = vunpack.c.l.b16 %v3067
  %v3105 = vunpack.c.l.b16 %v3068
  %v3106 = vunpack.c.l.b16 %v3069
  %v3107 = vunpack.c.l.b16 %v3070
  %v3108 = vunpack.c.l.b16 %v3071
  %v3109 = vunpack.c.l.b16 %v3072
  %v3110 = vunpack.c.l.b16 %v3073
  %v3111 = vunpack.c.l.b16 %v3074
  %v3112 = vunpack.c.l.b16 %v3075
  %v3113 = vunpack.c.l.b16 %v3076
  %v3114 = vunpack.c.l.b16 %v3077
  %v3115 = vunpack.c.l.b16 %v3078
  %v3116 = vunpack.c.l.b16 %v3079
  %v3117 = vunpack.c.l.b16 %v3080
  %v3118 = vpack.c.b16 %v3103, %v3102
  %v3119 = vpack.c.b16 %v3105, %v3104
  %v3120 = vpack.c.b16 %v3107, %v3106
  %v3121 = vpack.c.b16 %v3109, %v3108
  %v3122 = vpack.c.b16 %v3111, %v3110
  %v3123 = vpack.c.b16 %v3113, %v3112
  %v3124 = vpack.c.b16 %v3115, %v3114
  %v3125 = vpack.c.b16 %v3117, %v3116
  %3134 = vmatprep.subr.bf16.mxu0 0
  %3135 = vmatpush1.bf16.msra.mxu0 %v3118
  %3136 = vmatprep.subr.bf16.mxu0 0
  %3137 = vmatpush1.bf16.msra.mxu0 %v3119
  %3138 = vmatprep.subr.bf16.mxu0 0
  %3139 = vmatpush1.bf16.msra.mxu0 %v3120
  %3140 = vmatprep.subr.bf16.mxu0 0
  %3141 = vmatpush1.bf16.msra.mxu0 %v3121
  %3142 = vmatprep.subr.bf16.mxu0 0
  %3143 = vmatpush1.bf16.msra.mxu0 %v3122
  %3144 = vmatprep.subr.bf16.mxu0 0
  %3145 = vmatpush1.bf16.msra.mxu0 %v3123
  %3146 = vmatprep.subr.bf16.mxu0 0
  %3147 = vmatpush1.bf16.msra.mxu0 %v3124
  %3148 = vmatprep.subr.bf16.mxu0 0
  %3149 = vmatpush1.bf16.msra.mxu0 %v3125
  %3150 = vmatprep.subr.bf16.mxu0 0
  %3151 = vmatpush1.bf16.msra.mxu0 0
  %3152 = vmatprep.subr.bf16.mxu0 0
  %3153 = vmatpush1.bf16.msra.mxu0 0
  %3154 = vmatprep.subr.bf16.mxu0 0
  %3155 = vmatpush1.bf16.msra.mxu0 0
  %3156 = vmatprep.subr.bf16.mxu0 0
  %3157 = vmatpush1.bf16.msra.mxu0 0
  %3158 = vmatprep.subr.bf16.mxu0 0
  %3159 = vmatpush1.bf16.msra.mxu0 0
  %3160 = vmatprep.subr.bf16.mxu0 0
  %3161 = vmatpush1.bf16.msra.mxu0 0
  %3162 = vmatprep.subr.bf16.mxu0 0
  %3163 = vmatpush1.bf16.msra.mxu0 0
  %3164 = vmatprep.subr.bf16.mxu0 0
  %3165 = vmatpush1.bf16.msra.mxu0 0
  %3166 = vmatprep.mubr.bf16.mxu0 0
  %3167 = vmatmul.mubr.bf16.gmra.mrb[0].mxu0 %v3063
  %v3168 = vpop.f32.mrb[0].mxu0
  %v3169 = vadd.f32 %v3085, %v3168
  %v3170 = vpop.f32.mrb[0].mxu0
  %v3171 = vpop.f32.mrb[0].mxu0
  %v3172 = vpop.f32.mrb[0].mxu0
  %3173 = vdwg.mxu0
  %v3174 = vsub.f32 0.0, %v3169
  %v3175 = vmul.f32 %v3174, 1.442695
  %v3176 = vpow.pop %v3175
  %v3177 = vadd.f32 %v3176, 1.0
  %v3178 = vrcp.pop %v3177
  %v3179 = vmul.f32 1.0, %v3178
  %3180 = vst [vmem:[%s7] sm:$0xff] %v3179
  // Predicated region
  $region30: #{deepseq_cnn_forward.1} parent=0 // pred_check
    _
  $region31: #{deepseq_cnn_forward.1} parent=0 // pred_check_branch
    %3182 = sbr.rel (0) target = $region33
  $region32: #{deepseq_cnn_forward.1} parent=0 // pred_region
    _
  $region33: #{deepseq_cnn_forward.1} parent=0 // pred_fallthru
    _
  // Predicated region
  $region34: #{deepseq_cnn_forward.1} parent=0 // pred_check
    _
  $region35: #{deepseq_cnn_forward.1} parent=0 // pred_check_branch
    %3184 = sbr.rel (0) target = $region37
  $region36: #{deepseq_cnn_forward.1} parent=0 // pred_region
    _
  $region37: #{deepseq_cnn_forward.1} parent=0 // pred_fallthru
    _

</llo_original>
